<compile_context>
chip_gen: v6e
topology: v6e:2x2x1
jax: 0.10.0
libtpu: 0.0.40
codegen_flags: <defaults>
</compile_context>

<pallas_src>
import functools
import math
from typing import Optional, Tuple

import jax
import jax.numpy as jnp
from jax.experimental import pallas as pl
from jax.experimental.pallas import tpu as pltpu


def _round_up(x: int, m: int) -> int:
    return (x + m - 1) // m * m


def _lane_group(n: int) -> int:
    """Smallest G such that n*G is a multiple of 128 lanes."""
    return 128 // math.gcd(128, n)


# ----------------------------------------------------------------------------
# Fused Pallas kernel: chain of (matmul + bias + optional ReLU) on one batch tile
# ----------------------------------------------------------------------------
def _mlp_kernel(*refs, num_layers: int, act_flags: Tuple[bool, ...]):
    # refs = (x_ref, w0_ref, b0_ref, w1_ref, b1_ref, ..., o_ref)
    x_ref = refs[0]
    o_ref = refs[-1]
    h = x_ref[...]
    for l in range(num_layers):
        w_ref = refs[1 + 2 * l]
        b_ref = refs[2 + 2 * l]
        h = jnp.dot(h, w_ref[...], preferred_element_type=jnp.float32) + b_ref[...]
        if act_flags[l]:
            h = jnp.maximum(h, 0.0)  # ReLU activation layer
    o_ref[...] = h.astype(o_ref.dtype)


# ----------------------------------------------------------------------------
# MLP wrapper (mirrors MultiLayerPerceptron semantics)
# ----------------------------------------------------------------------------
class MultiLayerPerceptronPallas:
    """MLP of Linear -> [Dropout] -> Activation blocks, activation = ReLU.

    Dropout (eval mode) is identity, so `dropout_at` does not change the
    inference forward pass; it is kept for interface parity.
    """

    def __init__(self,
                 signal_shapes: Tuple[int, ...],
                 dropout_at: Tuple[int, ...] = (),
                 *,
                 drop_last_activation: bool = False,
                 key: jax.Array = None,
                 dtype=jnp.float32,
                 max_tile_rows: int = 1024):
        if key is None:
            key = jax.random.PRNGKey(0)
        self.signal_shapes = signal_shapes
        self.dropout_at = dropout_at
        self.drop_last_activation = drop_last_activation
        self.dtype = dtype
        self._max_tile_rows = max(int(max_tile_rows), 8)

        num_layers = len(signal_shapes) - 1
        self.weights = []
        self.biases = []
        for i in range(num_layers):
            fan_in, fan_out = signal_shapes[i], signal_shapes[i + 1]
            key, wk, bk = jax.random.split(key, 3)
            # torch.nn.Linear default init: U(-1/sqrt(fan_in), 1/sqrt(fan_in))
            bound = 1.0 / (fan_in ** 0.5)
            w = jax.random.uniform(wk, (fan_in, fan_out), dtype, -bound, bound)
            b = jax.random.uniform(bk, (1, fan_out), dtype, -bound, bound)
            self.weights.append(w)
            self.biases.append(b)

        # Activation applied after every Linear, except possibly the last
        # (matches `self._layers = self._layers[:-1]` in the torch module).
        self.apply_act = [True] * num_layers
        if drop_last_activation and num_layers > 0:
            self.apply_act[-1] = False

        # --- lane packing group G: make G*in_f and G*out_f multiples of 128 ---
        G = math.lcm(_lane_group(signal_shapes[0]), _lane_group(signal_shapes[-1]))
        packed_w_bytes = 4 * G * G * sum(
            signal_shapes[i] * signal_shapes[i + 1] for i in range(num_layers))
        if G > 64 or packed_w_bytes > 8 * 1024 * 1024:
            G = 1  # block-diagonal weights would be too big to keep resident -> no packing
        self._group = G

        eye = jnp.eye(G, dtype=dtype)
        # kron(I_G, W) is block-diagonal: processes G packed rows per lane-row exactly.
        self._packed_w = [jnp.kron(eye, w) for w in self.weights]       # (G*fin, G*fout)
        self._packed_b = [jnp.tile(b, (1, G)) for b in self.biases]     # (1, G*fout)

    def __call__(self, signal: jax.Array,
                 condition: Optional[jax.Array] = None) -> jax.Array:
        del condition  # unused, per the reference module
        in_f = self.signal_shapes[0]
        out_f = self.signal_shapes[-1]
        G = self._group
        num_layers = len(self._packed_w)

        lead_shape = signal.shape[:-1]
        x2d = signal.reshape((-1, in_f)).astype(self.dtype)
        B = x2d.shape[0]

        # --- tiling of the (packed) batch axis ---
        rows_p = -(-B // G)                                   # packed rows needed
        tile_cap = max(self._max_tile_rows // G, 8)
        tile_p = min(tile_cap, _round_up(rows_p, 8))
        tile_p = _round_up(tile_p, 8)
        grid = -(-rows_p // tile_p)
        rows_p_pad = grid * tile_p
        b_pad = rows_p_pad * G
        if b_pad != B:
            x2d = jnp.pad(x2d, ((0, b_pad - B), (0, 0)))
        # Row-major bitcast-style reshape: (b_pad, in_f) -> (rows_p_pad, G*in_f).
        xp = x2d.reshape(rows_p_pad, G * in_f)

        # --- specs: batch-tiled activations, resident full-array weights/biases ---
        in_specs = [pl.BlockSpec((tile_p, G * in_f), lambda i: (i, 0))]
        args = [xp]
        for w, b in zip(self._packed_w, self._packed_b):
            in_specs.append(pl.BlockSpec(w.shape, lambda i: (0, 0)))
            in_specs.append(pl.BlockSpec(b.shape, lambda i: (0, 0)))
            args.append(w)
            args.append(b)
        out_spec = pl.BlockSpec((tile_p, G * out_f), lambda i: (i, 0))

        flops = 2 * rows_p_pad * sum(w.shape[0] * w.shape[1] for w in self._packed_w)
        bytes_accessed = 4 * (xp.size + rows_p_pad * G * out_f
                              + sum(w.size + b.size
                                    for w, b in zip(self._packed_w, self._packed_b)))

        kernel = functools.partial(_mlp_kernel, num_layers=num_layers,
                                   act_flags=tuple(self.apply_act))
        out_packed = pl.pallas_call(
            kernel,
            out_shape=jax.ShapeDtypeStruct((rows_p_pad, G * out_f), self.dtype),
            grid_spec=pltpu.PrefetchScalarGridSpec(
                num_scalar_prefetch=0,
                grid=(grid,),
                in_specs=in_specs,
                out_specs=out_spec,
            ),
            compiler_params=pltpu.CompilerParams(
                dimension_semantics=("parallel",),
                vmem_limit_bytes=32 * 1024 * 1024,
            ),
            cost_estimate=pl.CostEstimate(flops=flops, transcendentals=0,
                                          bytes_accessed=bytes_accessed),
        )(*args)

        out2d = out_packed.reshape(b_pad, out_f)[:B]
        return out2d.reshape(lead_shape + (out_f,))


# ----------------------------------------------------------------------------
# Pure-JAX reference for correctness check
# ----------------------------------------------------------------------------
def _reference_forward(mlp: MultiLayerPerceptronPallas, signal: jax.Array) -> jax.Array:
    x = signal
    for w, b, act in zip(mlp.weights, mlp.biases, mlp.apply_act):
        x = x @ w + b[0]
        if act:
            x = jnp.maximum(x, 0.0)
    return x


if __name__ == "__main__":
    key = jax.random.PRNGKey(0)
    key, xk, mk = jax.random.split(key, 3)

    # signal_shapes=(16, 32, 32, 8), dropout after pair 0, ReLU activation,
    # drop_last_activation=True  -> Linear/ReLU x2 then final Linear (no act).
    # max_tile_rows=128 keeps tiles tiny so this small test exercises a
    # multi-step grid (grid=3) plus batch padding/slicing.
    mlp = MultiLayerPerceptronPallas(
        signal_shapes=(16, 32, 32, 8),
        dropout_at=(0,),
        drop_last_activation=True,
        key=mk,
        max_tile_rows=128,
    )

    # signal: (..., num_neurons_in_first_layer) = (2, 160, 16)
    x = jax.random.normal(xk, (2, 160, 16), dtype=jnp.float32)

    out = jax.block_until_ready(mlp(x))
    assert out.shape == (2, 160, 8), out.shape

    ref = _reference_forward(mlp, x)
    assert jnp.allclose(out, ref, atol=3e-5, rtol=3e-5), "mismatch vs reference"

    print("KERNEL_OK")
</pallas_src>

<mosaic_0001>
module attributes {stable_mosaic.version = 11 : i64} {
  func.func @_mlp_kernel(%arg0: i32, %arg1: memref<8x256xf32, #tpu.memory_space<vmem>>, %arg2: memref<256x512xf32, #tpu.memory_space<vmem>>, %arg3: memref<1x512xf32, #tpu.memory_space<vmem>>, %arg4: memref<512x512xf32, #tpu.memory_space<vmem>>, %arg5: memref<1x512xf32, #tpu.memory_space<vmem>>, %arg6: memref<512x128xf32, #tpu.memory_space<vmem>>, %arg7: memref<1x128xf32, #tpu.memory_space<vmem>>, %arg8: memref<8x128xf32, #tpu.memory_space<vmem>>) attributes {dimension_semantics = [#tpu.dimension_semantics<parallel>], iteration_bounds = array<i64: 3>, scalar_prefetch = 0 : i64, scratch_operands = 0 : i64, tpu.core_type = #tpu.core_type<tc>, window_params = [{transform_indices = @transform_0, window_bounds = array<i64: 8, 256>}, {pipeline_mode = #tpu.pipeline_mode<synchronous>, transform_indices = @transform_1, window_bounds = array<i64: 256, 512>}, {pipeline_mode = #tpu.pipeline_mode<synchronous>, transform_indices = @transform_2, window_bounds = array<i64: 1, 512>}, {pipeline_mode = #tpu.pipeline_mode<synchronous>, transform_indices = @transform_3, window_bounds = array<i64: 512, 512>}, {pipeline_mode = #tpu.pipeline_mode<synchronous>, transform_indices = @transform_4, window_bounds = array<i64: 1, 512>}, {pipeline_mode = #tpu.pipeline_mode<synchronous>, transform_indices = @transform_5, window_bounds = array<i64: 512, 128>}, {pipeline_mode = #tpu.pipeline_mode<synchronous>, transform_indices = @transform_6, window_bounds = array<i64: 1, 128>}, {transform_indices = @transform_7, window_bounds = array<i64: 8, 128>}]} {
    %c0 = arith.constant 0 : index
    %c0_0 = arith.constant 0 : index
    %0 = vector.load %arg1[%c0, %c0_0] : memref<8x256xf32, #tpu.memory_space<vmem>>, vector<8x256xf32>
    %c0_1 = arith.constant 0 : index
    %c0_2 = arith.constant 0 : index
    %1 = vector.load %arg2[%c0_1, %c0_2] : memref<256x512xf32, #tpu.memory_space<vmem>>, vector<256x512xf32>
    %cst = arith.constant dense<0.000000e+00> : vector<8x512xf32>
    %2 = tpu.matmul %0, %1, %cst {dimension_numbers = #tpu.dot_dimension_numbers<[1], [0], [0], [1], [0, 0, 1, 1], [], []>} : vector<8x256xf32>, vector<256x512xf32>, vector<8x512xf32> -> vector<8x512xf32>
    %c0_3 = arith.constant 0 : index
    %c0_4 = arith.constant 0 : index
    %3 = vector.load %arg3[%c0_3, %c0_4] : memref<1x512xf32, #tpu.memory_space<vmem>>, vector<1x512xf32>
    %4 = vector.broadcast %3 : vector<1x512xf32> to vector<8x512xf32>
    %5 = arith.addf %2, %4 : vector<8x512xf32>
    %cst_5 = arith.constant 0.000000e+00 : f32
    %6 = vector.broadcast %cst_5 : f32 to vector<8x512xf32>
    %7 = arith.maximumf %5, %6 : vector<8x512xf32>
    %c0_6 = arith.constant 0 : index
    %c0_7 = arith.constant 0 : index
    %8 = vector.load %arg4[%c0_6, %c0_7] : memref<512x512xf32, #tpu.memory_space<vmem>>, vector<512x512xf32>
    %cst_8 = arith.constant dense<0.000000e+00> : vector<8x512xf32>
    %9 = tpu.matmul %7, %8, %cst_8 {dimension_numbers = #tpu.dot_dimension_numbers<[1], [0], [0], [1], [0, 0, 1, 1], [], []>} : vector<8x512xf32>, vector<512x512xf32>, vector<8x512xf32> -> vector<8x512xf32>
    %c0_9 = arith.constant 0 : index
    %c0_10 = arith.constant 0 : index
    %10 = vector.load %arg5[%c0_9, %c0_10] : memref<1x512xf32, #tpu.memory_space<vmem>>, vector<1x512xf32>
    %11 = vector.broadcast %10 : vector<1x512xf32> to vector<8x512xf32>
    %12 = arith.addf %9, %11 : vector<8x512xf32>
    %cst_11 = arith.constant 0.000000e+00 : f32
    %13 = vector.broadcast %cst_11 : f32 to vector<8x512xf32>
    %14 = arith.maximumf %12, %13 : vector<8x512xf32>
    %c0_12 = arith.constant 0 : index
    %c0_13 = arith.constant 0 : index
    %15 = vector.load %arg6[%c0_12, %c0_13] : memref<512x128xf32, #tpu.memory_space<vmem>>, vector<512x128xf32>
    %cst_14 = arith.constant dense<0.000000e+00> : vector<8x128xf32>
    %16 = tpu.matmul %14, %15, %cst_14 {dimension_numbers = #tpu.dot_dimension_numbers<[1], [0], [0], [1], [0, 0, 1, 1], [], []>} : vector<8x512xf32>, vector<512x128xf32>, vector<8x128xf32> -> vector<8x128xf32>
    %c0_15 = arith.constant 0 : index
    %c0_16 = arith.constant 0 : index
    %17 = vector.load %arg7[%c0_15, %c0_16] : memref<1x128xf32, #tpu.memory_space<vmem>>, vector<1x128xf32>
    %18 = vector.broadcast %17 : vector<1x128xf32> to vector<8x128xf32>
    %19 = arith.addf %16, %18 : vector<8x128xf32>
    %c0_17 = arith.constant 0 : index
    %c0_18 = arith.constant 0 : index
    %20 = vector.load %arg8[%c0_17, %c0_18] : memref<8x128xf32, #tpu.memory_space<vmem>>, vector<8x128xf32>
    tpu.vector_store %arg8[%c0_17, %c0_18], %19 {strides = array<i32>} : memref<8x128xf32, #tpu.memory_space<vmem>>, vector<8x128xf32>,
    return
  }
  func.func @transform_0(%arg0: i32) -> (i32, i32) {
    %c0_i32 = arith.constant 0 : i32
    %c0_i32_0 = arith.constant 0 : i32
    return %arg0, %c0_i32 : i32, i32
  }
  func.func @transform_1(%arg0: i32) -> (i32, i32) {
    %c0_i32 = arith.constant 0 : i32
    %c0_i32_0 = arith.constant 0 : i32
    %c0_i32_1 = arith.constant 0 : i32
    return %c0_i32, %c0_i32_0 : i32, i32
  }
  func.func @transform_2(%arg0: i32) -> (i32, i32) {
    %c0_i32 = arith.constant 0 : i32
    %c0_i32_0 = arith.constant 0 : i32
    %c0_i32_1 = arith.constant 0 : i32
    return %c0_i32, %c0_i32_0 : i32, i32
  }
  func.func @transform_3(%arg0: i32) -> (i32, i32) {
    %c0_i32 = arith.constant 0 : i32
    %c0_i32_0 = arith.constant 0 : i32
    %c0_i32_1 = arith.constant 0 : i32
    return %c0_i32, %c0_i32_0 : i32, i32
  }
  func.func @transform_4(%arg0: i32) -> (i32, i32) {
    %c0_i32 = arith.constant 0 : i32
    %c0_i32_0 = arith.constant 0 : i32
    %c0_i32_1 = arith.constant 0 : i32
    return %c0_i32, %c0_i32_0 : i32, i32
  }
  func.func @transform_5(%arg0: i32) -> (i32, i32) {
    %c0_i32 = arith.constant 0 : i32
    %c0_i32_0 = arith.constant 0 : i32
    %c0_i32_1 = arith.constant 0 : i32
    return %c0_i32, %c0_i32_0 : i32, i32
  }
  func.func @transform_6(%arg0: i32) -> (i32, i32) {
    %c0_i32 = arith.constant 0 : i32
    %c0_i32_0 = arith.constant 0 : i32
    %c0_i32_1 = arith.constant 0 : i32
    return %c0_i32, %c0_i32_0 : i32, i32
  }
  func.func @transform_7(%arg0: i32) -> (i32, i32) {
    %c0_i32 = arith.constant 0 : i32
    %c0_i32_0 = arith.constant 0 : i32
    return %arg0, %c0_i32 : i32, i32
  }
}

</mosaic_0001>

<llo_original>
// kernel: tpu_custom_call.1
$region0: #{tpu_custom_call.1}
  #allocation0 [shape = 'u32[]', space=smem, size = 0x4, offset = 0x4, fixed_abs, tag = 'smem constant byte address 0x4 - core index']
  #allocation1 [shape = 'u32[144,128]{1,0:T(1,128)}', space=vmem, size = 0x12000, scoped, tag = 'internal scratch']
  %s0 = inlined_call_operand.hbm [shape: f32[24,256], index: 0, kind: input, shape index: {}]
  %s1 = inlined_call_operand.hbm [shape: f32[256,512], index: 1, kind: input, shape index: {}]
  %s2 = inlined_call_operand.hbm [shape: f32[1,512], index: 2, kind: input, shape index: {}]
  %s3 = inlined_call_operand.hbm [shape: f32[512,512], index: 3, kind: input, shape index: {}]
  %s4 = inlined_call_operand.vmem [shape: f32[1,512], index: 4, kind: input, shape index: {}]
  %s5 = inlined_call_operand.hbm [shape: f32[512,128], index: 5, kind: input, shape index: {}]
  %s6 = inlined_call_operand.vmem [shape: f32[1,128], index: 6, kind: input, shape index: {}]
  %s7 = inlined_call_operand.hbm [shape: f32[24,128], index: 7, kind: output, shape index: {}]
  %s8 = sld [smem:[#allocation0]]
  $region81: #{tpu_custom_call.1} parent=0
    _
  %s10 = ssub.s32 1, %s8
  %s11 = scalar_select 0, %s10, %s8
  $region1: #{tpu_custom_call.1} parent=0
    #allocation2 [shape = 'u8[16384]{0}', space=vmem, size = 0x4000, scoped, tag = 'input window, operand 0']
    #allocation3 [shape = 's32[2]{0}', space=sflag, size = 0x8, scoped, tag = 'scoped memory for tpu_custom_call.1']
    #allocation4 [shape = 's32[2]{0}', space=sflag, size = 0x8, scoped, tag = 'scoped memory for tpu_custom_call.1']
    #allocation5 [shape = 'u8[524288]{0}', space=vmem, size = 0x80000, scoped, tag = 'input window, operand 1, single buffered']
    #allocation6 [shape = 's32[1]{0}', space=sflag, size = 0x4, scoped, tag = 'scoped memory for tpu_custom_call.1']
    #allocation7 [shape = 'u8[2048]{0}', space=vmem, size = 0x800, scoped, tag = 'input window, operand 2, single buffered']
    #allocation8 [shape = 'u8[1048576]{0}', space=vmem, size = 0x100000, scoped, tag = 'input window, operand 3, single buffered']
    #allocation9 [shape = 's32[1]{0}', space=sflag, size = 0x4, scoped, tag = 'scoped memory for tpu_custom_call.1']
    #allocation10 [shape = 'u8[262144]{0}', space=vmem, size = 0x40000, scoped, tag = 'input window, operand 5, single buffered']
    #allocation11 [shape = 'u8[8192]{0}', space=vmem, size = 0x2000, scoped, tag = 'output window, operand 0']
    %12 = vsyncpa [#allocation3], 0
    %s13 = scalar_lea.sflag [#allocation3], 1
    %14 = vsyncpa %s13, 0
    %15 = vsyncpa [#allocation6], 0
    %16 = vsyncpa [#allocation9], 0
    %17 = vsyncpa [#allocation4], 0
    %s18 = scalar_lea.sflag [#allocation4], 1
    %19 = vsyncpa %s18, 0
    loop: start=0, step=1, limit=5
    $region2: #{tpu_custom_call.1} parent=1 // loop_pre_header
      _
    $region3: #{tpu_custom_call.1} parent=1 // loop_header
      %s21 = sphi 0, %s25
      %p22 = scmp.ge.s32.totalorder %s21, 5
      %s31 = sphi 0, %s33
      %s34 = sphi 0, %s31
      %s35 = sphi 0, %s34
      %s51 = sphi 0, %s35
      %s55 = sphi 0, %s55
      %s57 = sphi 0, %s55
      %s58 = sphi 0, %s57
      %s72 = sphi 0, %s58
      %s76 = sphi 0, %s76
      %s78 = sphi 0, %s76
      %s79 = sphi 0, %s78
      %s93 = sphi 0, %s79
      %s97 = sphi 0, %s97
      %s99 = sphi 0, %s97
      %s100 = sphi 0, %s99
      %s114 = sphi 0, %s100
      %s118 = sphi 0, %s118
      %s120 = sphi 0, %s118
      %s121 = sphi 0, %s120
      %s135 = sphi 0, %s121
      %s139 = sphi 0, %s139
      %s141 = sphi 0, %s139
      %s142 = sphi 0, %s141
      %s156 = sphi 0, %s142
      %s160 = sphi 0, %s160
      %s162 = sphi 0, %s160
      %s163 = sphi 0, %s162
      %s177 = sphi 0, %s163
      %s183 = sphi 0, %s185
      %s186 = sphi 0, %s183
      %s187 = sphi 0, %s186
      %s203 = sphi 0, %s187
    $region4: #{tpu_custom_call.1} parent=1 // loop_header_branch
      %24 = sbr.rel (%p22) target = $region8
    $region5: #{tpu_custom_call.1} parent=1 // loop_body
      %s26 = ssub.s32 %s21, 1
      %s27 = ssub.s32 %s21, 2
      %s28 = sadd.s32 %s21, 1
      %s29 = ssub.s32 %s21, %s28
      %p30 = scmp.eq.s32.totalorder %s29, 0
      %s32 = sadd.s32 %s31, 1
      %s33 = scalar_select %p30, %s31, %s32
      %p36 = pneg %p30
      %p37 = scmp.eq.s32.totalorder %s21, 2
      %p38 = por %p36, %p37
      %p39 = scmp.ne.s32.totalorder %s31, %s34
      %p40 = scmp.eq.s32.totalorder %s21, 0
      %p41 = por %p39, %p40
      %p42 = scmp.ne.s32.totalorder %s31, %s34
      %p43 = scmp.eq.s32.totalorder %s26, 2
      %p44 = por %p42, %p43
      %p45 = scmp.ne.s32.totalorder %s34, %s35
      %p46 = scmp.eq.s32.totalorder %s26, 0
      %p47 = por %p45, %p46
      %p48 = scmp.ne.s32.totalorder %s34, %s35
      %p49 = scmp.eq.s32.totalorder %s27, 2
      %p50 = por %p48, %p49
      %p52 = scmp.ne.s32.totalorder %s35, %s51
      %p53 = scmp.eq.s32.totalorder %s27, 0
      %p54 = por %p52, %p53
      %s56 = sadd.s32 %s55, 1
      %p59 = scmp.eq.s32.totalorder %s21, 2
      %p60 = scmp.ne.s32.totalorder %s55, %s57
      %p61 = scmp.eq.s32.totalorder %s21, 0
      %p62 = por %p60, %p61
      %p63 = scmp.ne.s32.totalorder %s55, %s57
      %p64 = scmp.eq.s32.totalorder %s26, 2
      %p65 = por %p63, %p64
      %p66 = scmp.ne.s32.totalorder %s57, %s58
      %p67 = scmp.eq.s32.totalorder %s26, 0
      %p68 = por %p66, %p67
      %p69 = scmp.ne.s32.totalorder %s57, %s58
      %p70 = scmp.eq.s32.totalorder %s27, 2
      %p71 = por %p69, %p70
      %p73 = scmp.ne.s32.totalorder %s58, %s72
      %p74 = scmp.eq.s32.totalorder %s27, 0
      %p75 = por %p73, %p74
      %s77 = sadd.s32 %s76, 1
      %p80 = scmp.eq.s32.totalorder %s21, 2
      %p81 = scmp.ne.s32.totalorder %s76, %s78
      %p82 = scmp.eq.s32.totalorder %s21, 0
      %p83 = por %p81, %p82
      %p84 = scmp.ne.s32.totalorder %s76, %s78
      %p85 = scmp.eq.s32.totalorder %s26, 2
      %p86 = por %p84, %p85
      %p87 = scmp.ne.s32.totalorder %s78, %s79
      %p88 = scmp.eq.s32.totalorder %s26, 0
      %p89 = por %p87, %p88
      %p90 = scmp.ne.s32.totalorder %s78, %s79
      %p91 = scmp.eq.s32.totalorder %s27, 2
      %p92 = por %p90, %p91
      %p94 = scmp.ne.s32.totalorder %s79, %s93
      %p95 = scmp.eq.s32.totalorder %s27, 0
      %p96 = por %p94, %p95
      %s98 = sadd.s32 %s97, 1
      %p101 = scmp.eq.s32.totalorder %s21, 2
      %p102 = scmp.ne.s32.totalorder %s97, %s99
      %p103 = scmp.eq.s32.totalorder %s21, 0
      %p104 = por %p102, %p103
      %p105 = scmp.ne.s32.totalorder %s97, %s99
      %p106 = scmp.eq.s32.totalorder %s26, 2
      %p107 = por %p105, %p106
      %p108 = scmp.ne.s32.totalorder %s99, %s100
      %p109 = scmp.eq.s32.totalorder %s26, 0
      %p110 = por %p108, %p109
      %p111 = scmp.ne.s32.totalorder %s99, %s100
      %p112 = scmp.eq.s32.totalorder %s27, 2
      %p113 = por %p111, %p112
      %p115 = scmp.ne.s32.totalorder %s100, %s114
      %p116 = scmp.eq.s32.totalorder %s27, 0
      %p117 = por %p115, %p116
      %s119 = sadd.s32 %s118, 1
      %p122 = scmp.eq.s32.totalorder %s21, 2
      %p123 = scmp.ne.s32.totalorder %s118, %s120
      %p124 = scmp.eq.s32.totalorder %s21, 0
      %p125 = por %p123, %p124
      %p126 = scmp.ne.s32.totalorder %s118, %s120
      %p127 = scmp.eq.s32.totalorder %s26, 2
      %p128 = por %p126, %p127
      %p129 = scmp.ne.s32.totalorder %s120, %s121
      %p130 = scmp.eq.s32.totalorder %s26, 0
      %p131 = por %p129, %p130
      %p132 = scmp.ne.s32.totalorder %s120, %s121
      %p133 = scmp.eq.s32.totalorder %s27, 2
      %p134 = por %p132, %p133
      %p136 = scmp.ne.s32.totalorder %s121, %s135
      %p137 = scmp.eq.s32.totalorder %s27, 0
      %p138 = por %p136, %p137
      %s140 = sadd.s32 %s139, 1
      %p143 = scmp.eq.s32.totalorder %s21, 2
      %p144 = scmp.ne.s32.totalorder %s139, %s141
      %p145 = scmp.eq.s32.totalorder %s21, 0
      %p146 = por %p144, %p145
      %p147 = scmp.ne.s32.totalorder %s139, %s141
      %p148 = scmp.eq.s32.totalorder %s26, 2
      %p149 = por %p147, %p148
      %p150 = scmp.ne.s32.totalorder %s141, %s142
      %p151 = scmp.eq.s32.totalorder %s26, 0
      %p152 = por %p150, %p151
      %p153 = scmp.ne.s32.totalorder %s141, %s142
      %p154 = scmp.eq.s32.totalorder %s27, 2
      %p155 = por %p153, %p154
      %p157 = scmp.ne.s32.totalorder %s142, %s156
      %p158 = scmp.eq.s32.totalorder %s27, 0
      %p159 = por %p157, %p158
      %s161 = sadd.s32 %s160, 1
      %p164 = scmp.eq.s32.totalorder %s21, 2
      %p165 = scmp.ne.s32.totalorder %s160, %s162
      %p166 = scmp.eq.s32.totalorder %s21, 0
      %p167 = por %p165, %p166
      %p168 = scmp.ne.s32.totalorder %s160, %s162
      %p169 = scmp.eq.s32.totalorder %s26, 2
      %p170 = por %p168, %p169
      %p171 = scmp.ne.s32.totalorder %s162, %s163
      %p172 = scmp.eq.s32.totalorder %s26, 0
      %p173 = por %p171, %p172
      %p174 = scmp.ne.s32.totalorder %s162, %s163
      %p175 = scmp.eq.s32.totalorder %s27, 2
      %p176 = por %p174, %p175
      %p178 = scmp.ne.s32.totalorder %s163, %s177
      %p179 = scmp.eq.s32.totalorder %s27, 0
      %p180 = por %p178, %p179
      %s181 = ssub.s32 %s21, %s28
      %p182 = scmp.eq.s32.totalorder %s181, 0
      %s184 = sadd.s32 %s183, 1
      %s185 = scalar_select %p182, %s183, %s184
      %p188 = pneg %p182
      %p189 = scmp.eq.s32.totalorder %s21, 2
      %p190 = por %p188, %p189
      %p191 = scmp.ne.s32.totalorder %s183, %s186
      %p192 = scmp.eq.s32.totalorder %s21, 0
      %p193 = por %p191, %p192
      %p194 = scmp.ne.s32.totalorder %s183, %s186
      %p195 = scmp.eq.s32.totalorder %s26, 2
      %p196 = por %p194, %p195
      %p197 = scmp.ne.s32.totalorder %s186, %s187
      %p198 = scmp.eq.s32.totalorder %s26, 0
      %p199 = por %p197, %p198
      %p200 = scmp.ne.s32.totalorder %s186, %s187
      %p201 = scmp.eq.s32.totalorder %s27, 2
      %p202 = por %p200, %p201
      %p204 = scmp.ne.s32.totalorder %s187, %s203
      %p205 = scmp.eq.s32.totalorder %s27, 0
      %p206 = por %p204, %p205
      %p207 = scmp.le.s32.totalorder 1, %s21
      %p208 = scmp.lt.s32.totalorder %s21, 4
      %p209 = pnand %p207, %p208
      %p210 = pneg %p209
      // Predicated region
      $region9: #{tpu_custom_call.1} parent=5 // pred_check
        _
      $region10: #{tpu_custom_call.1} parent=5 // pred_check_branch
        %212 = sbr.rel (%p209) target = $region12
      $region11: #{tpu_custom_call.1} parent=5 // pred_region
        %s213 = ssub.s32 %s21, 1
        // Predicated region
        $region13: #{tpu_custom_call.1} parent=11 // pred_check
          %p214 = pneg %p68
        $region14: #{tpu_custom_call.1} parent=11 // pred_check_branch
          %216 = sbr.rel (%p214) target = $region16
        $region15: #{tpu_custom_call.1} parent=11 // pred_region
          %s218 = ssub.s32 16384, 16384
          %219 = vsyncadd [#allocation6], %s218
          %s220 = sshll.u32 [#allocation5], 4
          %s221 = int_to_ptr.vmem [resolvable:$true] %s220
          %226 = dma.hbm_to_vmem [thread:$0]  %s1, 16384, %s221, [#allocation6], 512, 512, 32
        $region16: #{tpu_custom_call.1} parent=11 // pred_fallthru
          _
        // Predicated region
        $region17: #{tpu_custom_call.1} parent=11 // pred_check
          %p227 = pneg %p89
        $region18: #{tpu_custom_call.1} parent=11 // pred_check_branch
          %229 = sbr.rel (%p227) target = $region20
        $region19: #{tpu_custom_call.1} parent=11 // pred_region
          %s231 = ssub.s32 64, 64
          %232 = vsyncadd [#allocation6], %s231
          %s234 = sshll.u32 [#allocation7], 4
          %s235 = int_to_ptr.vmem [resolvable:$true] %s234
          %237 = dma.hbm_to_vmem [thread:$0]  %s2, 64, %s235, [#allocation6]
        $region20: #{tpu_custom_call.1} parent=11 // pred_fallthru
          _
        // Predicated region
        $region21: #{tpu_custom_call.1} parent=11 // pred_check
          %p238 = pneg %p110
        $region22: #{tpu_custom_call.1} parent=11 // pred_check_branch
          %240 = sbr.rel (%p238) target = $region24
        $region23: #{tpu_custom_call.1} parent=11 // pred_region
          %s242 = ssub.s32 32768, 32768
          %243 = vsyncadd [#allocation9], %s242
          %s244 = sshll.u32 [#allocation8], 4
          %s245 = int_to_ptr.vmem [resolvable:$true] %s244
          %250 = dma.hbm_to_vmem [thread:$0]  %s3, 32768, %s245, [#allocation9], 512, 512, 32
        $region24: #{tpu_custom_call.1} parent=11 // pred_fallthru
          _
        // Predicated region
        $region25: #{tpu_custom_call.1} parent=11 // pred_check
          %p251 = pneg %p131
        $region26: #{tpu_custom_call.1} parent=11 // pred_check_branch
          %253 = sbr.rel (%p251) target = $region28
        $region27: #{tpu_custom_call.1} parent=11 // pred_region
          _
        $region28: #{tpu_custom_call.1} parent=11 // pred_fallthru
          _
        // Predicated region
        $region29: #{tpu_custom_call.1} parent=11 // pred_check
          %p254 = pneg %p152
        $region30: #{tpu_custom_call.1} parent=11 // pred_check_branch
          %256 = sbr.rel (%p254) target = $region32
        $region31: #{tpu_custom_call.1} parent=11 // pred_region
          %s258 = ssub.s32 8192, 8192
          %259 = vsyncadd [#allocation9], %s258
          %s260 = sshll.u32 [#allocation10], 4
          %s261 = int_to_ptr.vmem [resolvable:$true] %s260
          %266 = dma.hbm_to_vmem [thread:$0]  %s5, 8192, %s261, [#allocation9], 128, 128, 8
        $region32: #{tpu_custom_call.1} parent=11 // pred_fallthru
          _
        // Predicated region
        $region33: #{tpu_custom_call.1} parent=11 // pred_check
          %p267 = pneg %p173
        $region34: #{tpu_custom_call.1} parent=11 // pred_check_branch
          %269 = sbr.rel (%p267) target = $region36
        $region35: #{tpu_custom_call.1} parent=11 // pred_region
          _
        $region36: #{tpu_custom_call.1} parent=11 // pred_fallthru
          _
      $region12: #{tpu_custom_call.1} parent=5 // pred_fallthru
        _
      %p270 = scmp.lt.s32.totalorder %s21, 3
      // Predicated region
      $region37: #{tpu_custom_call.1} parent=5 // pred_check
        %p271 = pneg %p270
      $region38: #{tpu_custom_call.1} parent=5 // pred_check_branch
        %273 = sbr.rel (%p271) target = $region40
      $region39: #{tpu_custom_call.1} parent=5 // pred_region
        // Predicated region
        $region41: #{tpu_custom_call.1} parent=39 // pred_check
          %p274 = pneg %p41
        $region42: #{tpu_custom_call.1} parent=39 // pred_check_branch
          %276 = sbr.rel (%p274) target = $region44
        $region43: #{tpu_custom_call.1} parent=39 // pred_region
          %s277 = sand.u32 %s31, 1
          %s278 = scalar_lea.sflag [#allocation3], %s277
          %s279 = sand.u32 %s31, 1
          %s280 = smul.addr %s279, 16
          %s281 = scalar_lea.vmem [#allocation2], %s280
          %s283 = ssub.s32 256, 256
          %284 = vsyncadd %s278, %s283
          %s285 = smul.addr %s21, 2
          %s286 = smul.addr %s285, 128
          %s287 = scalar_lea.hbm %s0, %s286
          %s289 = sshll.u32 %s281, 4
          %s290 = int_to_ptr.vmem [resolvable:$true] %s289
          %292 = dma.hbm_to_vmem [thread:$0]  %s287, 256, %s290, %s278
        $region44: #{tpu_custom_call.1} parent=39 // pred_fallthru
          _
      $region40: #{tpu_custom_call.1} parent=5 // pred_fallthru
        _
      %p293 = scmp.le.s32.totalorder 1, %s21
      %p294 = scmp.lt.s32.totalorder %s21, 4
      %p295 = pnand %p293, %p294
      %p296 = pneg %p295
      // Predicated region
      $region45: #{tpu_custom_call.1} parent=5 // pred_check
        _
      $region46: #{tpu_custom_call.1} parent=5 // pred_check_branch
        %298 = sbr.rel (%p295) target = $region48
      $region47: #{tpu_custom_call.1} parent=5 // pred_region
        %s299 = ssub.s32 %s21, 1
        %s300 = sand.u32 %s34, 1
        %s301 = scalar_lea.sflag [#allocation3], %s300
        %s302 = sand.u32 %s34, 1
        %s303 = smul.addr %s302, 16
        %s304 = scalar_lea.vmem [#allocation2], %s303
        // Predicated region
        $region49: #{tpu_custom_call.1} parent=47 // pred_check
          %p305 = pneg %p47
        $region50: #{tpu_custom_call.1} parent=47 // pred_check_branch
          %307 = sbr.rel (%p305) target = $region52
        $region51: #{tpu_custom_call.1} parent=47 // pred_region
          %308 = dma.done %s301, 256
        $region52: #{tpu_custom_call.1} parent=47 // pred_fallthru
          _
        // Predicated region
        $region53: #{tpu_custom_call.1} parent=47 // pred_check
          %p309 = pneg %p68
        $region54: #{tpu_custom_call.1} parent=47 // pred_check_branch
          %311 = sbr.rel (%p309) target = $region56
        $region55: #{tpu_custom_call.1} parent=47 // pred_region
          %312 = dma.done [#allocation6], 16384
        $region56: #{tpu_custom_call.1} parent=47 // pred_fallthru
          _
        // Predicated region
        $region57: #{tpu_custom_call.1} parent=47 // pred_check
          %p313 = pneg %p89
        $region58: #{tpu_custom_call.1} parent=47 // pred_check_branch
          %315 = sbr.rel (%p313) target = $region60
        $region59: #{tpu_custom_call.1} parent=47 // pred_region
          %316 = dma.done [#allocation6], 64
        $region60: #{tpu_custom_call.1} parent=47 // pred_fallthru
          _
        // Predicated region
        $region61: #{tpu_custom_call.1} parent=47 // pred_check
          %p317 = pneg %p110
        $region62: #{tpu_custom_call.1} parent=47 // pred_check_branch
          %319 = sbr.rel (%p317) target = $region64
        $region63: #{tpu_custom_call.1} parent=47 // pred_region
          %320 = dma.done [#allocation9], 32768
        $region64: #{tpu_custom_call.1} parent=47 // pred_fallthru
          _
        // Predicated region
        $region65: #{tpu_custom_call.1} parent=47 // pred_check
          %p321 = pneg %p152
        $region66: #{tpu_custom_call.1} parent=47 // pred_check_branch
          %323 = sbr.rel (%p321) target = $region68
        $region67: #{tpu_custom_call.1} parent=47 // pred_region
          %324 = dma.done [#allocation9], 8192
        $region68: #{tpu_custom_call.1} parent=47 // pred_fallthru
          _
        %s325 = sand.u32 %s34, 1
        %s326 = scalar_lea.sflag [#allocation3], %s325
        %s327 = sand.u32 %s34, 1
        %s328 = smul.addr %s327, 16
        %s329 = scalar_lea.vmem [#allocation2], %s328
        %p330 = pneg %p47
        %p331 = pneg %p44
        %p332 = pneg %p68
        %p333 = pneg %p65
        %p334 = pneg %p89
        %p335 = pneg %p86
        %p336 = pneg %p110
        %p337 = pneg %p107
        %p338 = pneg %p131
        %p339 = pneg %p128
        %p340 = pneg %p152
        %p341 = pneg %p149
        %p342 = pneg %p173
        %p343 = pneg %p170
        %p344 = pneg %p199
        %p345 = pneg %p196
        %s346 = sand.u32 %s186, 1
        %s347 = scalar_lea.sflag [#allocation4], %s346
        %s348 = sand.u32 %s186, 1
        %s349 = smul.addr %s348, 8
        %s350 = scalar_lea.vmem [#allocation11], %s349
        %v351 = vld [vmem:[%s304] sm:$0xff]
        %v352 = vld [vmem:[%s304 + $0x8] sm:$0xff]
        %v353 = vld [vmem:[#allocation5] sm:$0xff]
        %v354 = vld [vmem:[#allocation5 + $0x8] sm:$0xff]
        %v355 = vld [vmem:[#allocation5 + $0x10] sm:$0xff]
        %v356 = vld [vmem:[#allocation5 + $0x18] sm:$0xff]
        %v357 = vld [vmem:[#allocation5 + $0x20] sm:$0xff]
        %v358 = vld [vmem:[#allocation5 + $0x28] sm:$0xff]
        %v359 = vld [vmem:[#allocation5 + $0x30] sm:$0xff]
        %v360 = vld [vmem:[#allocation5 + $0x38] sm:$0xff]
        %v361 = vld [vmem:[#allocation5 + $0x40] sm:$0xff]
        %v362 = vld [vmem:[#allocation5 + $0x48] sm:$0xff]
        %v363 = vld [vmem:[#allocation5 + $0x50] sm:$0xff]
        %v364 = vld [vmem:[#allocation5 + $0x58] sm:$0xff]
        %v365 = vld [vmem:[#allocation5 + $0x60] sm:$0xff]
        %v366 = vld [vmem:[#allocation5 + $0x68] sm:$0xff]
        %v367 = vld [vmem:[#allocation5 + $0x70] sm:$0xff]
        %v368 = vld [vmem:[#allocation5 + $0x78] sm:$0xff]
        %v369 = vld [vmem:[#allocation5 + $0x80] sm:$0xff]
        %v370 = vld [vmem:[#allocation5 + $0x88] sm:$0xff]
        %v371 = vld [vmem:[#allocation5 + $0x90] sm:$0xff]
        %v372 = vld [vmem:[#allocation5 + $0x98] sm:$0xff]
        %v373 = vld [vmem:[#allocation5 + $0xa0] sm:$0xff]
        %v374 = vld [vmem:[#allocation5 + $0xa8] sm:$0xff]
        %v375 = vld [vmem:[#allocation5 + $0xb0] sm:$0xff]
        %v376 = vld [vmem:[#allocation5 + $0xb8] sm:$0xff]
        %v377 = vld [vmem:[#allocation5 + $0xc0] sm:$0xff]
        %v378 = vld [vmem:[#allocation5 + $0xc8] sm:$0xff]
        %v379 = vld [vmem:[#allocation5 + $0xd0] sm:$0xff]
        %v380 = vld [vmem:[#allocation5 + $0xd8] sm:$0xff]
        %v381 = vld [vmem:[#allocation5 + $0xe0] sm:$0xff]
        %v382 = vld [vmem:[#allocation5 + $0xe8] sm:$0xff]
        %v383 = vld [vmem:[#allocation5 + $0xf0] sm:$0xff]
        %v384 = vld [vmem:[#allocation5 + $0xf8] sm:$0xff]
        %v385 = vld [vmem:[#allocation5 + $0x100] sm:$0xff]
        %v386 = vld [vmem:[#allocation5 + $0x108] sm:$0xff]
        %v387 = vld [vmem:[#allocation5 + $0x110] sm:$0xff]
        %v388 = vld [vmem:[#allocation5 + $0x118] sm:$0xff]
        %v389 = vld [vmem:[#allocation5 + $0x120] sm:$0xff]
        %v390 = vld [vmem:[#allocation5 + $0x128] sm:$0xff]
        %v391 = vld [vmem:[#allocation5 + $0x130] sm:$0xff]
        %v392 = vld [vmem:[#allocation5 + $0x138] sm:$0xff]
        %v393 = vld [vmem:[#allocation5 + $0x140] sm:$0xff]
        %v394 = vld [vmem:[#allocation5 + $0x148] sm:$0xff]
        %v395 = vld [vmem:[#allocation5 + $0x150] sm:$0xff]
        %v396 = vld [vmem:[#allocation5 + $0x158] sm:$0xff]
        %v397 = vld [vmem:[#allocation5 + $0x160] sm:$0xff]
        %v398 = vld [vmem:[#allocation5 + $0x168] sm:$0xff]
        %v399 = vld [vmem:[#allocation5 + $0x170] sm:$0xff]
        %v400 = vld [vmem:[#allocation5 + $0x178] sm:$0xff]
        %v401 = vld [vmem:[#allocation5 + $0x180] sm:$0xff]
        %v402 = vld [vmem:[#allocation5 + $0x188] sm:$0xff]
        %v403 = vld [vmem:[#allocation5 + $0x190] sm:$0xff]
        %v404 = vld [vmem:[#allocation5 + $0x198] sm:$0xff]
        %v405 = vld [vmem:[#allocation5 + $0x1a0] sm:$0xff]
        %v406 = vld [vmem:[#allocation5 + $0x1a8] sm:$0xff]
        %v407 = vld [vmem:[#allocation5 + $0x1b0] sm:$0xff]
        %v408 = vld [vmem:[#allocation5 + $0x1b8] sm:$0xff]
        %v409 = vld [vmem:[#allocation5 + $0x1c0] sm:$0xff]
        %v410 = vld [vmem:[#allocation5 + $0x1c8] sm:$0xff]
        %v411 = vld [vmem:[#allocation5 + $0x1d0] sm:$0xff]
        %v412 = vld [vmem:[#allocation5 + $0x1d8] sm:$0xff]
        %v413 = vld [vmem:[#allocation5 + $0x1e0] sm:$0xff]
        %v414 = vld [vmem:[#allocation5 + $0x1e8] sm:$0xff]
        %v415 = vld [vmem:[#allocation5 + $0x1f0] sm:$0xff]
        %v416 = vld [vmem:[#allocation5 + $0x1f8] sm:$0xff]
        %v417 = vld [vmem:[#allocation5 + $0x200] sm:$0xff]
        %v418 = vld [vmem:[#allocation5 + $0x208] sm:$0xff]
        %v419 = vld [vmem:[#allocation5 + $0x210] sm:$0xff]
        %v420 = vld [vmem:[#allocation5 + $0x218] sm:$0xff]
        %v421 = vld [vmem:[#allocation5 + $0x220] sm:$0xff]
        %v422 = vld [vmem:[#allocation5 + $0x228] sm:$0xff]
        %v423 = vld [vmem:[#allocation5 + $0x230] sm:$0xff]
        %v424 = vld [vmem:[#allocation5 + $0x238] sm:$0xff]
        %v425 = vld [vmem:[#allocation5 + $0x240] sm:$0xff]
        %v426 = vld [vmem:[#allocation5 + $0x248] sm:$0xff]
        %v427 = vld [vmem:[#allocation5 + $0x250] sm:$0xff]
        %v428 = vld [vmem:[#allocation5 + $0x258] sm:$0xff]
        %v429 = vld [vmem:[#allocation5 + $0x260] sm:$0xff]
        %v430 = vld [vmem:[#allocation5 + $0x268] sm:$0xff]
        %v431 = vld [vmem:[#allocation5 + $0x270] sm:$0xff]
        %v432 = vld [vmem:[#allocation5 + $0x278] sm:$0xff]
        %v433 = vld [vmem:[#allocation5 + $0x280] sm:$0xff]
        %v434 = vld [vmem:[#allocation5 + $0x288] sm:$0xff]
        %v435 = vld [vmem:[#allocation5 + $0x290] sm:$0xff]
        %v436 = vld [vmem:[#allocation5 + $0x298] sm:$0xff]
        %v437 = vld [vmem:[#allocation5 + $0x2a0] sm:$0xff]
        %v438 = vld [vmem:[#allocation5 + $0x2a8] sm:$0xff]
        %v439 = vld [vmem:[#allocation5 + $0x2b0] sm:$0xff]
        %v440 = vld [vmem:[#allocation5 + $0x2b8] sm:$0xff]
        %v441 = vld [vmem:[#allocation5 + $0x2c0] sm:$0xff]
        %v442 = vld [vmem:[#allocation5 + $0x2c8] sm:$0xff]
        %v443 = vld [vmem:[#allocation5 + $0x2d0] sm:$0xff]
        %v444 = vld [vmem:[#allocation5 + $0x2d8] sm:$0xff]
        %v445 = vld [vmem:[#allocation5 + $0x2e0] sm:$0xff]
        %v446 = vld [vmem:[#allocation5 + $0x2e8] sm:$0xff]
        %v447 = vld [vmem:[#allocation5 + $0x2f0] sm:$0xff]
        %v448 = vld [vmem:[#allocation5 + $0x2f8] sm:$0xff]
        %v449 = vld [vmem:[#allocation5 + $0x300] sm:$0xff]
        %v450 = vld [vmem:[#allocation5 + $0x308] sm:$0xff]
        %v451 = vld [vmem:[#allocation5 + $0x310] sm:$0xff]
        %v452 = vld [vmem:[#allocation5 + $0x318] sm:$0xff]
        %v453 = vld [vmem:[#allocation5 + $0x320] sm:$0xff]
        %v454 = vld [vmem:[#allocation5 + $0x328] sm:$0xff]
        %v455 = vld [vmem:[#allocation5 + $0x330] sm:$0xff]
        %v456 = vld [vmem:[#allocation5 + $0x338] sm:$0xff]
        %v457 = vld [vmem:[#allocation5 + $0x340] sm:$0xff]
        %v458 = vld [vmem:[#allocation5 + $0x348] sm:$0xff]
        %v459 = vld [vmem:[#allocation5 + $0x350] sm:$0xff]
        %v460 = vld [vmem:[#allocation5 + $0x358] sm:$0xff]
        %v461 = vld [vmem:[#allocation5 + $0x360] sm:$0xff]
        %v462 = vld [vmem:[#allocation5 + $0x368] sm:$0xff]
        %v463 = vld [vmem:[#allocation5 + $0x370] sm:$0xff]
        %v464 = vld [vmem:[#allocation5 + $0x378] sm:$0xff]
        %v465 = vld [vmem:[#allocation5 + $0x380] sm:$0xff]
        %v466 = vld [vmem:[#allocation5 + $0x388] sm:$0xff]
        %v467 = vld [vmem:[#allocation5 + $0x390] sm:$0xff]
        %v468 = vld [vmem:[#allocation5 + $0x398] sm:$0xff]
        %v469 = vld [vmem:[#allocation5 + $0x3a0] sm:$0xff]
        %v470 = vld [vmem:[#allocation5 + $0x3a8] sm:$0xff]
        %v471 = vld [vmem:[#allocation5 + $0x3b0] sm:$0xff]
        %v472 = vld [vmem:[#allocation5 + $0x3b8] sm:$0xff]
        %v473 = vld [vmem:[#allocation5 + $0x3c0] sm:$0xff]
        %v474 = vld [vmem:[#allocation5 + $0x3c8] sm:$0xff]
        %v475 = vld [vmem:[#allocation5 + $0x3d0] sm:$0xff]
        %v476 = vld [vmem:[#allocation5 + $0x3d8] sm:$0xff]
        %v477 = vld [vmem:[#allocation5 + $0x3e0] sm:$0xff]
        %v478 = vld [vmem:[#allocation5 + $0x3e8] sm:$0xff]
        %v479 = vld [vmem:[#allocation5 + $0x3f0] sm:$0xff]
        %v480 = vld [vmem:[#allocation5 + $0x3f8] sm:$0xff]
        %v481 = vld [vmem:[#allocation7] sm:$0xf]
        %v483 = vlaneseq
        %v484 = vshrl.u32 %v483, 7
        %v485 = vsub.s32 0, %v484
        %v486 = vrot.slane %v481, %v485
        %v487 = vlaneseq
        %v488 = vshrl.u32 %v487, 7
        %v489 = vsub.s32 1, %v488
        %v490 = vrot.slane %v481, %v489
        %v491 = vlaneseq
        %v492 = vshrl.u32 %v491, 7
        %v493 = vsub.s32 2, %v492
        %v494 = vrot.slane %v481, %v493
        %v495 = vlaneseq
        %v496 = vshrl.u32 %v495, 7
        %v497 = vsub.s32 3, %v496
        %v498 = vrot.slane %v481, %v497
        %503 = vmatprep.subr.mxu0 %v414
        %504 = vmatpush1.msra.mxu0 %v413
        %505 = vmatprep.subr.mxu0 %v410
        %506 = vmatpush1.msra.mxu0 %v409
        %507 = vmatprep.subr.mxu0 %v406
        %508 = vmatpush1.msra.mxu0 %v405
        %509 = vmatprep.subr.mxu0 %v402
        %510 = vmatpush1.msra.mxu0 %v401
        %511 = vmatprep.subr.mxu0 %v398
        %512 = vmatpush1.msra.mxu0 %v397
        %513 = vmatprep.subr.mxu0 %v394
        %514 = vmatpush1.msra.mxu0 %v393
        %515 = vmatprep.subr.mxu0 %v390
        %516 = vmatpush1.msra.mxu0 %v389
        %517 = vmatprep.subr.mxu0 %v386
        %518 = vmatpush1.msra.mxu0 %v385
        %519 = vmatprep.subr.mxu0 %v382
        %520 = vmatpush1.msra.mxu0 %v381
        %521 = vmatprep.subr.mxu0 %v378
        %522 = vmatpush1.msra.mxu0 %v377
        %523 = vmatprep.subr.mxu0 %v374
        %524 = vmatpush1.msra.mxu0 %v373
        %525 = vmatprep.subr.mxu0 %v370
        %526 = vmatpush1.msra.mxu0 %v369
        %527 = vmatprep.subr.mxu0 %v366
        %528 = vmatpush1.msra.mxu0 %v365
        %529 = vmatprep.subr.mxu0 %v362
        %530 = vmatpush1.msra.mxu0 %v361
        %531 = vmatprep.subr.mxu0 %v358
        %532 = vmatpush1.msra.mxu0 %v357
        %533 = vmatprep.subr.mxu0 %v354
        %534 = vmatpush1.msra.mxu0 %v353
        %535 = vmatprep.subr.mxu0 %v478
        %536 = vmatpush2.msra.mxu0 %v477
        %537 = vmatprep.subr.mxu0 %v474
        %538 = vmatpush2.msra.mxu0 %v473
        %539 = vmatprep.subr.mxu0 %v470
        %540 = vmatpush2.msra.mxu0 %v469
        %541 = vmatprep.subr.mxu0 %v466
        %542 = vmatpush2.msra.mxu0 %v465
        %543 = vmatprep.subr.mxu0 %v462
        %544 = vmatpush2.msra.mxu0 %v461
        %545 = vmatprep.subr.mxu0 %v458
        %546 = vmatpush2.msra.mxu0 %v457
        %547 = vmatprep.subr.mxu0 %v454
        %548 = vmatpush2.msra.mxu0 %v453
        %549 = vmatprep.subr.mxu0 %v450
        %550 = vmatpush2.msra.mxu0 %v449
        %551 = vmatprep.subr.mxu0 %v446
        %552 = vmatpush2.msra.mxu0 %v445
        %553 = vmatprep.subr.mxu0 %v442
        %554 = vmatpush2.msra.mxu0 %v441
        %555 = vmatprep.subr.mxu0 %v438
        %556 = vmatpush2.msra.mxu0 %v437
        %557 = vmatprep.subr.mxu0 %v434
        %558 = vmatpush2.msra.mxu0 %v433
        %559 = vmatprep.subr.mxu0 %v430
        %560 = vmatpush2.msra.mxu0 %v429
        %561 = vmatprep.subr.mxu0 %v426
        %562 = vmatpush2.msra.mxu0 %v425
        %563 = vmatprep.subr.mxu0 %v422
        %564 = vmatpush2.msra.mxu0 %v421
        %565 = vmatprep.subr.mxu0 %v418
        %566 = vmatpush2.msra.mxu0 %v417
        %567 = vmatprep.mubr.f32.mxu0 %v352
        %568 = vmatmul.mubr.f32.gmra.mxu0 %v351
        %v569 = vpop.f32.mrf.mxu0
        %v570 = vadd.f32 %v486, %v569
        %v571 = vpop.f32.mrf.mxu0
        %v572 = vadd.f32 %v490, %v571
        %573 = vdwg.mxu0
        %574 = vmatprep.subr.mxu0 %v416
        %575 = vmatpush1.msra.mxu0 %v415
        %576 = vmatprep.subr.mxu0 %v412
        %577 = vmatpush1.msra.mxu0 %v411
        %578 = vmatprep.subr.mxu0 %v408
        %579 = vmatpush1.msra.mxu0 %v407
        %580 = vmatprep.subr.mxu0 %v404
        %581 = vmatpush1.msra.mxu0 %v403
        %582 = vmatprep.subr.mxu0 %v400
        %583 = vmatpush1.msra.mxu0 %v399
        %584 = vmatprep.subr.mxu0 %v396
        %585 = vmatpush1.msra.mxu0 %v395
        %586 = vmatprep.subr.mxu0 %v392
        %587 = vmatpush1.msra.mxu0 %v391
        %588 = vmatprep.subr.mxu0 %v388
        %589 = vmatpush1.msra.mxu0 %v387
        %590 = vmatprep.subr.mxu0 %v384
        %591 = vmatpush1.msra.mxu0 %v383
        %592 = vmatprep.subr.mxu0 %v380
        %593 = vmatpush1.msra.mxu0 %v379
        %594 = vmatprep.subr.mxu0 %v376
        %595 = vmatpush1.msra.mxu0 %v375
        %596 = vmatprep.subr.mxu0 %v372
        %597 = vmatpush1.msra.mxu0 %v371
        %598 = vmatprep.subr.mxu0 %v368
        %599 = vmatpush1.msra.mxu0 %v367
        %600 = vmatprep.subr.mxu0 %v364
        %601 = vmatpush1.msra.mxu0 %v363
        %602 = vmatprep.subr.mxu0 %v360
        %603 = vmatpush1.msra.mxu0 %v359
        %604 = vmatprep.subr.mxu0 %v356
        %605 = vmatpush1.msra.mxu0 %v355
        %606 = vmatprep.subr.mxu0 %v480
        %607 = vmatpush2.msra.mxu0 %v479
        %608 = vmatprep.subr.mxu0 %v476
        %609 = vmatpush2.msra.mxu0 %v475
        %610 = vmatprep.subr.mxu0 %v472
        %611 = vmatpush2.msra.mxu0 %v471
        %612 = vmatprep.subr.mxu0 %v468
        %613 = vmatpush2.msra.mxu0 %v467
        %614 = vmatprep.subr.mxu0 %v464
        %615 = vmatpush2.msra.mxu0 %v463
        %616 = vmatprep.subr.mxu0 %v460
        %617 = vmatpush2.msra.mxu0 %v459
        %618 = vmatprep.subr.mxu0 %v456
        %619 = vmatpush2.msra.mxu0 %v455
        %620 = vmatprep.subr.mxu0 %v452
        %621 = vmatpush2.msra.mxu0 %v451
        %622 = vmatprep.subr.mxu0 %v448
        %623 = vmatpush2.msra.mxu0 %v447
        %624 = vmatprep.subr.mxu0 %v444
        %625 = vmatpush2.msra.mxu0 %v443
        %626 = vmatprep.subr.mxu0 %v440
        %627 = vmatpush2.msra.mxu0 %v439
        %628 = vmatprep.subr.mxu0 %v436
        %629 = vmatpush2.msra.mxu0 %v435
        %630 = vmatprep.subr.mxu0 %v432
        %631 = vmatpush2.msra.mxu0 %v431
        %632 = vmatprep.subr.mxu0 %v428
        %633 = vmatpush2.msra.mxu0 %v427
        %634 = vmatprep.subr.mxu0 %v424
        %635 = vmatpush2.msra.mxu0 %v423
        %636 = vmatprep.subr.mxu0 %v420
        %637 = vmatpush2.msra.mxu0 %v419
        %638 = vmatprep.mubr.f32.mxu0 %v352
        %639 = vmatmul.mubr.f32.gmra.mxu0 %v351
        %v640 = vpop.f32.mrf.mxu0
        %v641 = vadd.f32 %v494, %v640
        %v642 = vpop.f32.mrf.mxu0
        %v643 = vadd.f32 %v498, %v642
        %644 = vdwg.mxu0
        %v645 = vmax.f32 %v570, 0.0
        %v646 = vmax.f32 %v572, 0.0
        %v647 = vmax.f32 %v641, 0.0
        %v648 = vmax.f32 %v643, 0.0
        %v649 = vld [vmem:[#allocation8] sm:$0xff]
        %v650 = vld [vmem:[#allocation8 + $0x8] sm:$0xff]
        %v651 = vld [vmem:[#allocation8 + $0x10] sm:$0xff]
        %v652 = vld [vmem:[#allocation8 + $0x18] sm:$0xff]
        %v653 = vld [vmem:[#allocation8 + $0x20] sm:$0xff]
        %v654 = vld [vmem:[#allocation8 + $0x28] sm:$0xff]
        %v655 = vld [vmem:[#allocation8 + $0x30] sm:$0xff]
        %v656 = vld [vmem:[#allocation8 + $0x38] sm:$0xff]
        %v657 = vld [vmem:[#allocation8 + $0x40] sm:$0xff]
        %v658 = vld [vmem:[#allocation8 + $0x48] sm:$0xff]
        %v659 = vld [vmem:[#allocation8 + $0x50] sm:$0xff]
        %v660 = vld [vmem:[#allocation8 + $0x58] sm:$0xff]
        %v661 = vld [vmem:[#allocation8 + $0x60] sm:$0xff]
        %v662 = vld [vmem:[#allocation8 + $0x68] sm:$0xff]
        %v663 = vld [vmem:[#allocation8 + $0x70] sm:$0xff]
        %v664 = vld [vmem:[#allocation8 + $0x78] sm:$0xff]
        %v665 = vld [vmem:[#allocation8 + $0x80] sm:$0xff]
        %v666 = vld [vmem:[#allocation8 + $0x88] sm:$0xff]
        %v667 = vld [vmem:[#allocation8 + $0x90] sm:$0xff]
        %v668 = vld [vmem:[#allocation8 + $0x98] sm:$0xff]
        %v669 = vld [vmem:[#allocation8 + $0xa0] sm:$0xff]
        %v670 = vld [vmem:[#allocation8 + $0xa8] sm:$0xff]
        %v671 = vld [vmem:[#allocation8 + $0xb0] sm:$0xff]
        %v672 = vld [vmem:[#allocation8 + $0xb8] sm:$0xff]
        %v673 = vld [vmem:[#allocation8 + $0xc0] sm:$0xff]
        %v674 = vld [vmem:[#allocation8 + $0xc8] sm:$0xff]
        %v675 = vld [vmem:[#allocation8 + $0xd0] sm:$0xff]
        %v676 = vld [vmem:[#allocation8 + $0xd8] sm:$0xff]
        %v677 = vld [vmem:[#allocation8 + $0xe0] sm:$0xff]
        %v678 = vld [vmem:[#allocation8 + $0xe8] sm:$0xff]
        %v679 = vld [vmem:[#allocation8 + $0xf0] sm:$0xff]
        %v680 = vld [vmem:[#allocation8 + $0xf8] sm:$0xff]
        %v681 = vld [vmem:[#allocation8 + $0x100] sm:$0xff]
        %v682 = vld [vmem:[#allocation8 + $0x108] sm:$0xff]
        %v683 = vld [vmem:[#allocation8 + $0x110] sm:$0xff]
        %v684 = vld [vmem:[#allocation8 + $0x118] sm:$0xff]
        %v685 = vld [vmem:[#allocation8 + $0x120] sm:$0xff]
        %v686 = vld [vmem:[#allocation8 + $0x128] sm:$0xff]
        %v687 = vld [vmem:[#allocation8 + $0x130] sm:$0xff]
        %v688 = vld [vmem:[#allocation8 + $0x138] sm:$0xff]
        %v689 = vld [vmem:[#allocation8 + $0x140] sm:$0xff]
        %v690 = vld [vmem:[#allocation8 + $0x148] sm:$0xff]
        %v691 = vld [vmem:[#allocation8 + $0x150] sm:$0xff]
        %v692 = vld [vmem:[#allocation8 + $0x158] sm:$0xff]
        %v693 = vld [vmem:[#allocation8 + $0x160] sm:$0xff]
        %v694 = vld [vmem:[#allocation8 + $0x168] sm:$0xff]
        %v695 = vld [vmem:[#allocation8 + $0x170] sm:$0xff]
        %v696 = vld [vmem:[#allocation8 + $0x178] sm:$0xff]
        %v697 = vld [vmem:[#allocation8 + $0x180] sm:$0xff]
        %v698 = vld [vmem:[#allocation8 + $0x188] sm:$0xff]
        %v699 = vld [vmem:[#allocation8 + $0x190] sm:$0xff]
        %v700 = vld [vmem:[#allocation8 + $0x198] sm:$0xff]
        %v701 = vld [vmem:[#allocation8 + $0x1a0] sm:$0xff]
        %v702 = vld [vmem:[#allocation8 + $0x1a8] sm:$0xff]
        %v703 = vld [vmem:[#allocation8 + $0x1b0] sm:$0xff]
        %v704 = vld [vmem:[#allocation8 + $0x1b8] sm:$0xff]
        %v705 = vld [vmem:[#allocation8 + $0x1c0] sm:$0xff]
        %v706 = vld [vmem:[#allocation8 + $0x1c8] sm:$0xff]
        %v707 = vld [vmem:[#allocation8 + $0x1d0] sm:$0xff]
        %v708 = vld [vmem:[#allocation8 + $0x1d8] sm:$0xff]
        %v709 = vld [vmem:[#allocation8 + $0x1e0] sm:$0xff]
        %v710 = vld [vmem:[#allocation8 + $0x1e8] sm:$0xff]
        %v711 = vld [vmem:[#allocation8 + $0x1f0] sm:$0xff]
        %v712 = vld [vmem:[#allocation8 + $0x1f8] sm:$0xff]
        %v713 = vld [vmem:[#allocation8 + $0x200] sm:$0xff]
        %v714 = vld [vmem:[#allocation8 + $0x208] sm:$0xff]
        %v715 = vld [vmem:[#allocation8 + $0x210] sm:$0xff]
        %v716 = vld [vmem:[#allocation8 + $0x218] sm:$0xff]
        %v717 = vld [vmem:[#allocation8 + $0x220] sm:$0xff]
        %v718 = vld [vmem:[#allocation8 + $0x228] sm:$0xff]
        %v719 = vld [vmem:[#allocation8 + $0x230] sm:$0xff]
        %v720 = vld [vmem:[#allocation8 + $0x238] sm:$0xff]
        %v721 = vld [vmem:[#allocation8 + $0x240] sm:$0xff]
        %v722 = vld [vmem:[#allocation8 + $0x248] sm:$0xff]
        %v723 = vld [vmem:[#allocation8 + $0x250] sm:$0xff]
        %v724 = vld [vmem:[#allocation8 + $0x258] sm:$0xff]
        %v725 = vld [vmem:[#allocation8 + $0x260] sm:$0xff]
        %v726 = vld [vmem:[#allocation8 + $0x268] sm:$0xff]
        %v727 = vld [vmem:[#allocation8 + $0x270] sm:$0xff]
        %v728 = vld [vmem:[#allocation8 + $0x278] sm:$0xff]
        %v729 = vld [vmem:[#allocation8 + $0x280] sm:$0xff]
        %v730 = vld [vmem:[#allocation8 + $0x288] sm:$0xff]
        %v731 = vld [vmem:[#allocation8 + $0x290] sm:$0xff]
        %v732 = vld [vmem:[#allocation8 + $0x298] sm:$0xff]
        %v733 = vld [vmem:[#allocation8 + $0x2a0] sm:$0xff]
        %v734 = vld [vmem:[#allocation8 + $0x2a8] sm:$0xff]
        %v735 = vld [vmem:[#allocation8 + $0x2b0] sm:$0xff]
        %v736 = vld [vmem:[#allocation8 + $0x2b8] sm:$0xff]
        %v737 = vld [vmem:[#allocation8 + $0x2c0] sm:$0xff]
        %v738 = vld [vmem:[#allocation8 + $0x2c8] sm:$0xff]
        %v739 = vld [vmem:[#allocation8 + $0x2d0] sm:$0xff]
        %v740 = vld [vmem:[#allocation8 + $0x2d8] sm:$0xff]
        %v741 = vld [vmem:[#allocation8 + $0x2e0] sm:$0xff]
        %v742 = vld [vmem:[#allocation8 + $0x2e8] sm:$0xff]
        %v743 = vld [vmem:[#allocation8 + $0x2f0] sm:$0xff]
        %v744 = vld [vmem:[#allocation8 + $0x2f8] sm:$0xff]
        %v745 = vld [vmem:[#allocation8 + $0x300] sm:$0xff]
        %v746 = vld [vmem:[#allocation8 + $0x308] sm:$0xff]
        %v747 = vld [vmem:[#allocation8 + $0x310] sm:$0xff]
        %v748 = vld [vmem:[#allocation8 + $0x318] sm:$0xff]
        %v749 = vld [vmem:[#allocation8 + $0x320] sm:$0xff]
        %v750 = vld [vmem:[#allocation8 + $0x328] sm:$0xff]
        %v751 = vld [vmem:[#allocation8 + $0x330] sm:$0xff]
        %v752 = vld [vmem:[#allocation8 + $0x338] sm:$0xff]
        %v753 = vld [vmem:[#allocation8 + $0x340] sm:$0xff]
        %v754 = vld [vmem:[#allocation8 + $0x348] sm:$0xff]
        %v755 = vld [vmem:[#allocation8 + $0x350] sm:$0xff]
        %v756 = vld [vmem:[#allocation8 + $0x358] sm:$0xff]
        %v757 = vld [vmem:[#allocation8 + $0x360] sm:$0xff]
        %v758 = vld [vmem:[#allocation8 + $0x368] sm:$0xff]
        %v759 = vld [vmem:[#allocation8 + $0x370] sm:$0xff]
        %v760 = vld [vmem:[#allocation8 + $0x378] sm:$0xff]
        %v761 = vld [vmem:[#allocation8 + $0x380] sm:$0xff]
        %v762 = vld [vmem:[#allocation8 + $0x388] sm:$0xff]
        %v763 = vld [vmem:[#allocation8 + $0x390] sm:$0xff]
        %v764 = vld [vmem:[#allocation8 + $0x398] sm:$0xff]
        %v765 = vld [vmem:[#allocation8 + $0x3a0] sm:$0xff]
        %v766 = vld [vmem:[#allocation8 + $0x3a8] sm:$0xff]
        %v767 = vld [vmem:[#allocation8 + $0x3b0] sm:$0xff]
        %v768 = vld [vmem:[#allocation8 + $0x3b8] sm:$0xff]
        %v769 = vld [vmem:[#allocation8 + $0x3c0] sm:$0xff]
        %v770 = vld [vmem:[#allocation8 + $0x3c8] sm:$0xff]
        %v771 = vld [vmem:[#allocation8 + $0x3d0] sm:$0xff]
        %v772 = vld [vmem:[#allocation8 + $0x3d8] sm:$0xff]
        %v773 = vld [vmem:[#allocation8 + $0x3e0] sm:$0xff]
        %v774 = vld [vmem:[#allocation8 + $0x3e8] sm:$0xff]
        %v775 = vld [vmem:[#allocation8 + $0x3f0] sm:$0xff]
        %v776 = vld [vmem:[#allocation8 + $0x3f8] sm:$0xff]
        %v777 = vld [vmem:[#allocation8 + $0x400] sm:$0xff]
        %v778 = vld [vmem:[#allocation8 + $0x408] sm:$0xff]
        %v779 = vld [vmem:[#allocation8 + $0x410] sm:$0xff]
        %v780 = vld [vmem:[#allocation8 + $0x418] sm:$0xff]
        %v781 = vld [vmem:[#allocation8 + $0x420] sm:$0xff]
        %v782 = vld [vmem:[#allocation8 + $0x428] sm:$0xff]
        %v783 = vld [vmem:[#allocation8 + $0x430] sm:$0xff]
        %v784 = vld [vmem:[#allocation8 + $0x438] sm:$0xff]
        %v785 = vld [vmem:[#allocation8 + $0x440] sm:$0xff]
        %v786 = vld [vmem:[#allocation8 + $0x448] sm:$0xff]
        %v787 = vld [vmem:[#allocation8 + $0x450] sm:$0xff]
        %v788 = vld [vmem:[#allocation8 + $0x458] sm:$0xff]
        %v789 = vld [vmem:[#allocation8 + $0x460] sm:$0xff]
        %v790 = vld [vmem:[#allocation8 + $0x468] sm:$0xff]
        %v791 = vld [vmem:[#allocation8 + $0x470] sm:$0xff]
        %v792 = vld [vmem:[#allocation8 + $0x478] sm:$0xff]
        %v793 = vld [vmem:[#allocation8 + $0x480] sm:$0xff]
        %v794 = vld [vmem:[#allocation8 + $0x488] sm:$0xff]
        %v795 = vld [vmem:[#allocation8 + $0x490] sm:$0xff]
        %v796 = vld [vmem:[#allocation8 + $0x498] sm:$0xff]
        %v797 = vld [vmem:[#allocation8 + $0x4a0] sm:$0xff]
        %v798 = vld [vmem:[#allocation8 + $0x4a8] sm:$0xff]
        %v799 = vld [vmem:[#allocation8 + $0x4b0] sm:$0xff]
        %v800 = vld [vmem:[#allocation8 + $0x4b8] sm:$0xff]
        %v801 = vld [vmem:[#allocation8 + $0x4c0] sm:$0xff]
        %v802 = vld [vmem:[#allocation8 + $0x4c8] sm:$0xff]
        %v803 = vld [vmem:[#allocation8 + $0x4d0] sm:$0xff]
        %v804 = vld [vmem:[#allocation8 + $0x4d8] sm:$0xff]
        %v805 = vld [vmem:[#allocation8 + $0x4e0] sm:$0xff]
        %v806 = vld [vmem:[#allocation8 + $0x4e8] sm:$0xff]
        %v807 = vld [vmem:[#allocation8 + $0x4f0] sm:$0xff]
        %v808 = vld [vmem:[#allocation8 + $0x4f8] sm:$0xff]
        %v809 = vld [vmem:[#allocation8 + $0x500] sm:$0xff]
        %v810 = vld [vmem:[#allocation8 + $0x508] sm:$0xff]
        %v811 = vld [vmem:[#allocation8 + $0x510] sm:$0xff]
        %v812 = vld [vmem:[#allocation8 + $0x518] sm:$0xff]
        %v813 = vld [vmem:[#allocation8 + $0x520] sm:$0xff]
        %v814 = vld [vmem:[#allocation8 + $0x528] sm:$0xff]
        %v815 = vld [vmem:[#allocation8 + $0x530] sm:$0xff]
        %v816 = vld [vmem:[#allocation8 + $0x538] sm:$0xff]
        %v817 = vld [vmem:[#allocation8 + $0x540] sm:$0xff]
        %v818 = vld [vmem:[#allocation8 + $0x548] sm:$0xff]
        %v819 = vld [vmem:[#allocation8 + $0x550] sm:$0xff]
        %v820 = vld [vmem:[#allocation8 + $0x558] sm:$0xff]
        %v821 = vld [vmem:[#allocation8 + $0x560] sm:$0xff]
        %v822 = vld [vmem:[#allocation8 + $0x568] sm:$0xff]
        %v823 = vld [vmem:[#allocation8 + $0x570] sm:$0xff]
        %v824 = vld [vmem:[#allocation8 + $0x578] sm:$0xff]
        %v825 = vld [vmem:[#allocation8 + $0x580] sm:$0xff]
        %v826 = vld [vmem:[#allocation8 + $0x588] sm:$0xff]
        %v827 = vld [vmem:[#allocation8 + $0x590] sm:$0xff]
        %v828 = vld [vmem:[#allocation8 + $0x598] sm:$0xff]
        %v829 = vld [vmem:[#allocation8 + $0x5a0] sm:$0xff]
        %v830 = vld [vmem:[#allocation8 + $0x5a8] sm:$0xff]
        %v831 = vld [vmem:[#allocation8 + $0x5b0] sm:$0xff]
        %v832 = vld [vmem:[#allocation8 + $0x5b8] sm:$0xff]
        %v833 = vld [vmem:[#allocation8 + $0x5c0] sm:$0xff]
        %v834 = vld [vmem:[#allocation8 + $0x5c8] sm:$0xff]
        %v835 = vld [vmem:[#allocation8 + $0x5d0] sm:$0xff]
        %v836 = vld [vmem:[#allocation8 + $0x5d8] sm:$0xff]
        %v837 = vld [vmem:[#allocation8 + $0x5e0] sm:$0xff]
        %v838 = vld [vmem:[#allocation8 + $0x5e8] sm:$0xff]
        %v839 = vld [vmem:[#allocation8 + $0x5f0] sm:$0xff]
        %v840 = vld [vmem:[#allocation8 + $0x5f8] sm:$0xff]
        %v841 = vld [vmem:[#allocation8 + $0x600] sm:$0xff]
        %v842 = vld [vmem:[#allocation8 + $0x608] sm:$0xff]
        %v843 = vld [vmem:[#allocation8 + $0x610] sm:$0xff]
        %v844 = vld [vmem:[#allocation8 + $0x618] sm:$0xff]
        %v845 = vld [vmem:[#allocation8 + $0x620] sm:$0xff]
        %v846 = vld [vmem:[#allocation8 + $0x628] sm:$0xff]
        %v847 = vld [vmem:[#allocation8 + $0x630] sm:$0xff]
        %v848 = vld [vmem:[#allocation8 + $0x638] sm:$0xff]
        %v849 = vld [vmem:[#allocation8 + $0x640] sm:$0xff]
        %v850 = vld [vmem:[#allocation8 + $0x648] sm:$0xff]
        %v851 = vld [vmem:[#allocation8 + $0x650] sm:$0xff]
        %v852 = vld [vmem:[#allocation8 + $0x658] sm:$0xff]
        %v853 = vld [vmem:[#allocation8 + $0x660] sm:$0xff]
        %v854 = vld [vmem:[#allocation8 + $0x668] sm:$0xff]
        %v855 = vld [vmem:[#allocation8 + $0x670] sm:$0xff]
        %v856 = vld [vmem:[#allocation8 + $0x678] sm:$0xff]
        %v857 = vld [vmem:[#allocation8 + $0x680] sm:$0xff]
        %v858 = vld [vmem:[#allocation8 + $0x688] sm:$0xff]
        %v859 = vld [vmem:[#allocation8 + $0x690] sm:$0xff]
        %v860 = vld [vmem:[#allocation8 + $0x698] sm:$0xff]
        %v861 = vld [vmem:[#allocation8 + $0x6a0] sm:$0xff]
        %v862 = vld [vmem:[#allocation8 + $0x6a8] sm:$0xff]
        %v863 = vld [vmem:[#allocation8 + $0x6b0] sm:$0xff]
        %v864 = vld [vmem:[#allocation8 + $0x6b8] sm:$0xff]
        %v865 = vld [vmem:[#allocation8 + $0x6c0] sm:$0xff]
        %v866 = vld [vmem:[#allocation8 + $0x6c8] sm:$0xff]
        %v867 = vld [vmem:[#allocation8 + $0x6d0] sm:$0xff]
        %v868 = vld [vmem:[#allocation8 + $0x6d8] sm:$0xff]
        %v869 = vld [vmem:[#allocation8 + $0x6e0] sm:$0xff]
        %v870 = vld [vmem:[#allocation8 + $0x6e8] sm:$0xff]
        %v871 = vld [vmem:[#allocation8 + $0x6f0] sm:$0xff]
        %v872 = vld [vmem:[#allocation8 + $0x6f8] sm:$0xff]
        %v873 = vld [vmem:[#allocation8 + $0x700] sm:$0xff]
        %v874 = vld [vmem:[#allocation8 + $0x708] sm:$0xff]
        %v875 = vld [vmem:[#allocation8 + $0x710] sm:$0xff]
        %v876 = vld [vmem:[#allocation8 + $0x718] sm:$0xff]
        %v877 = vld [vmem:[#allocation8 + $0x720] sm:$0xff]
        %v878 = vld [vmem:[#allocation8 + $0x728] sm:$0xff]
        %v879 = vld [vmem:[#allocation8 + $0x730] sm:$0xff]
        %v880 = vld [vmem:[#allocation8 + $0x738] sm:$0xff]
        %v881 = vld [vmem:[#allocation8 + $0x740] sm:$0xff]
        %v882 = vld [vmem:[#allocation8 + $0x748] sm:$0xff]
        %v883 = vld [vmem:[#allocation8 + $0x750] sm:$0xff]
        %v884 = vld [vmem:[#allocation8 + $0x758] sm:$0xff]
        %v885 = vld [vmem:[#allocation8 + $0x760] sm:$0xff]
        %v886 = vld [vmem:[#allocation8 + $0x768] sm:$0xff]
        %v887 = vld [vmem:[#allocation8 + $0x770] sm:$0xff]
        %v888 = vld [vmem:[#allocation8 + $0x778] sm:$0xff]
        %v889 = vld [vmem:[#allocation8 + $0x780] sm:$0xff]
        %v890 = vld [vmem:[#allocation8 + $0x788] sm:$0xff]
        %v891 = vld [vmem:[#allocation8 + $0x790] sm:$0xff]
        %v892 = vld [vmem:[#allocation8 + $0x798] sm:$0xff]
        %v893 = vld [vmem:[#allocation8 + $0x7a0] sm:$0xff]
        %v894 = vld [vmem:[#allocation8 + $0x7a8] sm:$0xff]
        %v895 = vld [vmem:[#allocation8 + $0x7b0] sm:$0xff]
        %v896 = vld [vmem:[#allocation8 + $0x7b8] sm:$0xff]
        %v897 = vld [vmem:[#allocation8 + $0x7c0] sm:$0xff]
        %v898 = vld [vmem:[#allocation8 + $0x7c8] sm:$0xff]
        %v899 = vld [vmem:[#allocation8 + $0x7d0] sm:$0xff]
        %v900 = vld [vmem:[#allocation8 + $0x7d8] sm:$0xff]
        %v901 = vld [vmem:[#allocation8 + $0x7e0] sm:$0xff]
        %v902 = vld [vmem:[#allocation8 + $0x7e8] sm:$0xff]
        %v903 = vld [vmem:[#allocation8 + $0x7f0] sm:$0xff]
        %v904 = vld [vmem:[#allocation8 + $0x7f8] sm:$0xff]
        %v905 = vld [vmem:[%s4] sm:$0xf]
        %v907 = vlaneseq
        %v908 = vshrl.u32 %v907, 7
        %v909 = vsub.s32 0, %v908
        %v910 = vrot.slane %v905, %v909
        %v911 = vlaneseq
        %v912 = vshrl.u32 %v911, 7
        %v913 = vsub.s32 1, %v912
        %v914 = vrot.slane %v905, %v913
        %v915 = vlaneseq
        %v916 = vshrl.u32 %v915, 7
        %v917 = vsub.s32 2, %v916
        %v918 = vrot.slane %v905, %v917
        %v919 = vlaneseq
        %v920 = vshrl.u32 %v919, 7
        %v921 = vsub.s32 3, %v920
        %v922 = vrot.slane %v905, %v921
        %927 = vmatprep.subr.mxu0 %v710
        %928 = vmatpush1.msra.mxu0 %v709
        %929 = vmatprep.subr.mxu0 %v706
        %930 = vmatpush1.msra.mxu0 %v705
        %931 = vmatprep.subr.mxu0 %v702
        %932 = vmatpush1.msra.mxu0 %v701
        %933 = vmatprep.subr.mxu0 %v698
        %934 = vmatpush1.msra.mxu0 %v697
        %935 = vmatprep.subr.mxu0 %v694
        %936 = vmatpush1.msra.mxu0 %v693
        %937 = vmatprep.subr.mxu0 %v690
        %938 = vmatpush1.msra.mxu0 %v689
        %939 = vmatprep.subr.mxu0 %v686
        %940 = vmatpush1.msra.mxu0 %v685
        %941 = vmatprep.subr.mxu0 %v682
        %942 = vmatpush1.msra.mxu0 %v681
        %943 = vmatprep.subr.mxu0 %v678
        %944 = vmatpush1.msra.mxu0 %v677
        %945 = vmatprep.subr.mxu0 %v674
        %946 = vmatpush1.msra.mxu0 %v673
        %947 = vmatprep.subr.mxu0 %v670
        %948 = vmatpush1.msra.mxu0 %v669
        %949 = vmatprep.subr.mxu0 %v666
        %950 = vmatpush1.msra.mxu0 %v665
        %951 = vmatprep.subr.mxu0 %v662
        %952 = vmatpush1.msra.mxu0 %v661
        %953 = vmatprep.subr.mxu0 %v658
        %954 = vmatpush1.msra.mxu0 %v657
        %955 = vmatprep.subr.mxu0 %v654
        %956 = vmatpush1.msra.mxu0 %v653
        %957 = vmatprep.subr.mxu0 %v650
        %958 = vmatpush1.msra.mxu0 %v649
        %959 = vmatprep.subr.mxu0 %v774
        %960 = vmatpush2.msra.mxu0 %v773
        %961 = vmatprep.subr.mxu0 %v770
        %962 = vmatpush2.msra.mxu0 %v769
        %963 = vmatprep.subr.mxu0 %v766
        %964 = vmatpush2.msra.mxu0 %v765
        %965 = vmatprep.subr.mxu0 %v762
        %966 = vmatpush2.msra.mxu0 %v761
        %967 = vmatprep.subr.mxu0 %v758
        %968 = vmatpush2.msra.mxu0 %v757
        %969 = vmatprep.subr.mxu0 %v754
        %970 = vmatpush2.msra.mxu0 %v753
        %971 = vmatprep.subr.mxu0 %v750
        %972 = vmatpush2.msra.mxu0 %v749
        %973 = vmatprep.subr.mxu0 %v746
        %974 = vmatpush2.msra.mxu0 %v745
        %975 = vmatprep.subr.mxu0 %v742
        %976 = vmatpush2.msra.mxu0 %v741
        %977 = vmatprep.subr.mxu0 %v738
        %978 = vmatpush2.msra.mxu0 %v737
        %979 = vmatprep.subr.mxu0 %v734
        %980 = vmatpush2.msra.mxu0 %v733
        %981 = vmatprep.subr.mxu0 %v730
        %982 = vmatpush2.msra.mxu0 %v729
        %983 = vmatprep.subr.mxu0 %v726
        %984 = vmatpush2.msra.mxu0 %v725
        %985 = vmatprep.subr.mxu0 %v722
        %986 = vmatpush2.msra.mxu0 %v721
        %987 = vmatprep.subr.mxu0 %v718
        %988 = vmatpush2.msra.mxu0 %v717
        %989 = vmatprep.subr.mxu0 %v714
        %990 = vmatpush2.msra.mxu0 %v713
        %991 = vmatprep.mubr.f32.mxu0 %v646
        %992 = vmatmul.mubr.f32.gmra.mxu0 %v645
        %v993 = vpop.f32.mrf.mxu0
        %v994 = vadd.f32 %v910, %v993
        %v995 = vpop.f32.mrf.mxu0
        %v996 = vadd.f32 %v914, %v995
        %997 = vdwg.mxu0
        %998 = vmatprep.subr.mxu0 %v838
        %999 = vmatpush1.msra.mxu0 %v837
        %1000 = vmatprep.subr.mxu0 %v834
        %1001 = vmatpush1.msra.mxu0 %v833
        %1002 = vmatprep.subr.mxu0 %v830
        %1003 = vmatpush1.msra.mxu0 %v829
        %1004 = vmatprep.subr.mxu0 %v826
        %1005 = vmatpush1.msra.mxu0 %v825
        %1006 = vmatprep.subr.mxu0 %v822
        %1007 = vmatpush1.msra.mxu0 %v821
        %1008 = vmatprep.subr.mxu0 %v818
        %1009 = vmatpush1.msra.mxu0 %v817
        %1010 = vmatprep.subr.mxu0 %v814
        %1011 = vmatpush1.msra.mxu0 %v813
        %1012 = vmatprep.subr.mxu0 %v810
        %1013 = vmatpush1.msra.mxu0 %v809
        %1014 = vmatprep.subr.mxu0 %v806
        %1015 = vmatpush1.msra.mxu0 %v805
        %1016 = vmatprep.subr.mxu0 %v802
        %1017 = vmatpush1.msra.mxu0 %v801
        %1018 = vmatprep.subr.mxu0 %v798
        %1019 = vmatpush1.msra.mxu0 %v797
        %1020 = vmatprep.subr.mxu0 %v794
        %1021 = vmatpush1.msra.mxu0 %v793
        %1022 = vmatprep.subr.mxu0 %v790
        %1023 = vmatpush1.msra.mxu0 %v789
        %1024 = vmatprep.subr.mxu0 %v786
        %1025 = vmatpush1.msra.mxu0 %v785
        %1026 = vmatprep.subr.mxu0 %v782
        %1027 = vmatpush1.msra.mxu0 %v781
        %1028 = vmatprep.subr.mxu0 %v778
        %1029 = vmatpush1.msra.mxu0 %v777
        %1030 = vmatprep.subr.mxu0 %v902
        %1031 = vmatpush2.msra.mxu0 %v901
        %1032 = vmatprep.subr.mxu0 %v898
        %1033 = vmatpush2.msra.mxu0 %v897
        %1034 = vmatprep.subr.mxu0 %v894
        %1035 = vmatpush2.msra.mxu0 %v893
        %1036 = vmatprep.subr.mxu0 %v890
        %1037 = vmatpush2.msra.mxu0 %v889
        %1038 = vmatprep.subr.mxu0 %v886
        %1039 = vmatpush2.msra.mxu0 %v885
        %1040 = vmatprep.subr.mxu0 %v882
        %1041 = vmatpush2.msra.mxu0 %v881
        %1042 = vmatprep.subr.mxu0 %v878
        %1043 = vmatpush2.msra.mxu0 %v877
        %1044 = vmatprep.subr.mxu0 %v874
        %1045 = vmatpush2.msra.mxu0 %v873
        %1046 = vmatprep.subr.mxu0 %v870
        %1047 = vmatpush2.msra.mxu0 %v869
        %1048 = vmatprep.subr.mxu0 %v866
        %1049 = vmatpush2.msra.mxu0 %v865
        %1050 = vmatprep.subr.mxu0 %v862
        %1051 = vmatpush2.msra.mxu0 %v861
        %1052 = vmatprep.subr.mxu0 %v858
        %1053 = vmatpush2.msra.mxu0 %v857
        %1054 = vmatprep.subr.mxu0 %v854
        %1055 = vmatpush2.msra.mxu0 %v853
        %1056 = vmatprep.subr.mxu0 %v850
        %1057 = vmatpush2.msra.mxu0 %v849
        %1058 = vmatprep.subr.mxu0 %v846
        %1059 = vmatpush2.msra.mxu0 %v845
        %1060 = vmatprep.subr.mxu0 %v842
        %1061 = vmatpush2.msra.mxu0 %v841
        %1062 = vmatprep.mubr.f32.mxu0 %v648
        %1063 = vmatmul.mubr.f32.gmra.mxu0 %v647
        %v1064 = vpop.f32.mrf.mxu0
        %v1065 = vadd.f32 %v994, %v1064
        %v1066 = vpop.f32.mrf.mxu0
        %v1067 = vadd.f32 %v996, %v1066
        %1068 = vdwg.mxu0
        %1069 = vmatprep.subr.mxu0 %v712
        %1070 = vmatpush1.msra.mxu0 %v711
        %1071 = vmatprep.subr.mxu0 %v708
        %1072 = vmatpush1.msra.mxu0 %v707
        %1073 = vmatprep.subr.mxu0 %v704
        %1074 = vmatpush1.msra.mxu0 %v703
        %1075 = vmatprep.subr.mxu0 %v700
        %1076 = vmatpush1.msra.mxu0 %v699
        %1077 = vmatprep.subr.mxu0 %v696
        %1078 = vmatpush1.msra.mxu0 %v695
        %1079 = vmatprep.subr.mxu0 %v692
        %1080 = vmatpush1.msra.mxu0 %v691
        %1081 = vmatprep.subr.mxu0 %v688
        %1082 = vmatpush1.msra.mxu0 %v687
        %1083 = vmatprep.subr.mxu0 %v684
        %1084 = vmatpush1.msra.mxu0 %v683
        %1085 = vmatprep.subr.mxu0 %v680
        %1086 = vmatpush1.msra.mxu0 %v679
        %1087 = vmatprep.subr.mxu0 %v676
        %1088 = vmatpush1.msra.mxu0 %v675
        %1089 = vmatprep.subr.mxu0 %v672
        %1090 = vmatpush1.msra.mxu0 %v671
        %1091 = vmatprep.subr.mxu0 %v668
        %1092 = vmatpush1.msra.mxu0 %v667
        %1093 = vmatprep.subr.mxu0 %v664
        %1094 = vmatpush1.msra.mxu0 %v663
        %1095 = vmatprep.subr.mxu0 %v660
        %1096 = vmatpush1.msra.mxu0 %v659
        %1097 = vmatprep.subr.mxu0 %v656
        %1098 = vmatpush1.msra.mxu0 %v655
        %1099 = vmatprep.subr.mxu0 %v652
        %1100 = vmatpush1.msra.mxu0 %v651
        %1101 = vmatprep.subr.mxu0 %v776
        %1102 = vmatpush2.msra.mxu0 %v775
        %1103 = vmatprep.subr.mxu0 %v772
        %1104 = vmatpush2.msra.mxu0 %v771
        %1105 = vmatprep.subr.mxu0 %v768
        %1106 = vmatpush2.msra.mxu0 %v767
        %1107 = vmatprep.subr.mxu0 %v764
        %1108 = vmatpush2.msra.mxu0 %v763
        %1109 = vmatprep.subr.mxu0 %v760
        %1110 = vmatpush2.msra.mxu0 %v759
        %1111 = vmatprep.subr.mxu0 %v756
        %1112 = vmatpush2.msra.mxu0 %v755
        %1113 = vmatprep.subr.mxu0 %v752
        %1114 = vmatpush2.msra.mxu0 %v751
        %1115 = vmatprep.subr.mxu0 %v748
        %1116 = vmatpush2.msra.mxu0 %v747
        %1117 = vmatprep.subr.mxu0 %v744
        %1118 = vmatpush2.msra.mxu0 %v743
        %1119 = vmatprep.subr.mxu0 %v740
        %1120 = vmatpush2.msra.mxu0 %v739
        %1121 = vmatprep.subr.mxu0 %v736
        %1122 = vmatpush2.msra.mxu0 %v735
        %1123 = vmatprep.subr.mxu0 %v732
        %1124 = vmatpush2.msra.mxu0 %v731
        %1125 = vmatprep.subr.mxu0 %v728
        %1126 = vmatpush2.msra.mxu0 %v727
        %1127 = vmatprep.subr.mxu0 %v724
        %1128 = vmatpush2.msra.mxu0 %v723
        %1129 = vmatprep.subr.mxu0 %v720
        %1130 = vmatpush2.msra.mxu0 %v719
        %1131 = vmatprep.subr.mxu0 %v716
        %1132 = vmatpush2.msra.mxu0 %v715
        %1133 = vmatprep.mubr.f32.mxu0 %v646
        %1134 = vmatmul.mubr.f32.gmra.mxu0 %v645
        %v1135 = vpop.f32.mrf.mxu0
        %v1136 = vadd.f32 %v918, %v1135
        %v1137 = vpop.f32.mrf.mxu0
        %v1138 = vadd.f32 %v922, %v1137
        %1139 = vdwg.mxu0
        %1140 = vmatprep.subr.mxu0 %v840
        %1141 = vmatpush1.msra.mxu0 %v839
        %1142 = vmatprep.subr.mxu0 %v836
        %1143 = vmatpush1.msra.mxu0 %v835
        %1144 = vmatprep.subr.mxu0 %v832
        %1145 = vmatpush1.msra.mxu0 %v831
        %1146 = vmatprep.subr.mxu0 %v828
        %1147 = vmatpush1.msra.mxu0 %v827
        %1148 = vmatprep.subr.mxu0 %v824
        %1149 = vmatpush1.msra.mxu0 %v823
        %1150 = vmatprep.subr.mxu0 %v820
        %1151 = vmatpush1.msra.mxu0 %v819
        %1152 = vmatprep.subr.mxu0 %v816
        %1153 = vmatpush1.msra.mxu0 %v815
        %1154 = vmatprep.subr.mxu0 %v812
        %1155 = vmatpush1.msra.mxu0 %v811
        %1156 = vmatprep.subr.mxu0 %v808
        %1157 = vmatpush1.msra.mxu0 %v807
        %1158 = vmatprep.subr.mxu0 %v804
        %1159 = vmatpush1.msra.mxu0 %v803
        %1160 = vmatprep.subr.mxu0 %v800
        %1161 = vmatpush1.msra.mxu0 %v799
        %1162 = vmatprep.subr.mxu0 %v796
        %1163 = vmatpush1.msra.mxu0 %v795
        %1164 = vmatprep.subr.mxu0 %v792
        %1165 = vmatpush1.msra.mxu0 %v791
        %1166 = vmatprep.subr.mxu0 %v788
        %1167 = vmatpush1.msra.mxu0 %v787
        %1168 = vmatprep.subr.mxu0 %v784
        %1169 = vmatpush1.msra.mxu0 %v783
        %1170 = vmatprep.subr.mxu0 %v780
        %1171 = vmatpush1.msra.mxu0 %v779
        %1172 = vmatprep.subr.mxu0 %v904
        %1173 = vmatpush2.msra.mxu0 %v903
        %1174 = vmatprep.subr.mxu0 %v900
        %1175 = vmatpush2.msra.mxu0 %v899
        %1176 = vmatprep.subr.mxu0 %v896
        %1177 = vmatpush2.msra.mxu0 %v895
        %1178 = vmatprep.subr.mxu0 %v892
        %1179 = vmatpush2.msra.mxu0 %v891
        %1180 = vmatprep.subr.mxu0 %v888
        %1181 = vmatpush2.msra.mxu0 %v887
        %1182 = vmatprep.subr.mxu0 %v884
        %1183 = vmatpush2.msra.mxu0 %v883
        %1184 = vmatprep.subr.mxu0 %v880
        %1185 = vmatpush2.msra.mxu0 %v879
        %1186 = vmatprep.subr.mxu0 %v876
        %1187 = vmatpush2.msra.mxu0 %v875
        %1188 = vmatprep.subr.mxu0 %v872
        %1189 = vmatpush2.msra.mxu0 %v871
        %1190 = vmatprep.subr.mxu0 %v868
        %1191 = vmatpush2.msra.mxu0 %v867
        %1192 = vmatprep.subr.mxu0 %v864
        %1193 = vmatpush2.msra.mxu0 %v863
        %1194 = vmatprep.subr.mxu0 %v860
        %1195 = vmatpush2.msra.mxu0 %v859
        %1196 = vmatprep.subr.mxu0 %v856
        %1197 = vmatpush2.msra.mxu0 %v855
        %1198 = vmatprep.subr.mxu0 %v852
        %1199 = vmatpush2.msra.mxu0 %v851
        %1200 = vmatprep.subr.mxu0 %v848
        %1201 = vmatpush2.msra.mxu0 %v847
        %1202 = vmatprep.subr.mxu0 %v844
        %1203 = vmatpush2.msra.mxu0 %v843
        %1204 = vmatprep.mubr.f32.mxu0 %v648
        %1205 = vmatmul.mubr.f32.gmra.mxu0 %v647
        %v1206 = vpop.f32.mrf.mxu0
        %v1207 = vadd.f32 %v1136, %v1206
        %v1208 = vpop.f32.mrf.mxu0
        %v1209 = vadd.f32 %v1138, %v1208
        %1210 = vdwg.mxu0
        %v1211 = vmax.f32 %v1065, 0.0
        %v1212 = vmax.f32 %v1067, 0.0
        %v1213 = vmax.f32 %v1207, 0.0
        %v1214 = vmax.f32 %v1209, 0.0
        %v1215 = vld [vmem:[#allocation10] sm:$0xff]
        %v1216 = vld [vmem:[#allocation10 + $0x8] sm:$0xff]
        %v1217 = vld [vmem:[#allocation10 + $0x10] sm:$0xff]
        %v1218 = vld [vmem:[#allocation10 + $0x18] sm:$0xff]
        %v1219 = vld [vmem:[#allocation10 + $0x20] sm:$0xff]
        %v1220 = vld [vmem:[#allocation10 + $0x28] sm:$0xff]
        %v1221 = vld [vmem:[#allocation10 + $0x30] sm:$0xff]
        %v1222 = vld [vmem:[#allocation10 + $0x38] sm:$0xff]
        %v1223 = vld [vmem:[#allocation10 + $0x40] sm:$0xff]
        %v1224 = vld [vmem:[#allocation10 + $0x48] sm:$0xff]
        %v1225 = vld [vmem:[#allocation10 + $0x50] sm:$0xff]
        %v1226 = vld [vmem:[#allocation10 + $0x58] sm:$0xff]
        %v1227 = vld [vmem:[#allocation10 + $0x60] sm:$0xff]
        %v1228 = vld [vmem:[#allocation10 + $0x68] sm:$0xff]
        %v1229 = vld [vmem:[#allocation10 + $0x70] sm:$0xff]
        %v1230 = vld [vmem:[#allocation10 + $0x78] sm:$0xff]
        %v1231 = vld [vmem:[#allocation10 + $0x80] sm:$0xff]
        %v1232 = vld [vmem:[#allocation10 + $0x88] sm:$0xff]
        %v1233 = vld [vmem:[#allocation10 + $0x90] sm:$0xff]
        %v1234 = vld [vmem:[#allocation10 + $0x98] sm:$0xff]
        %v1235 = vld [vmem:[#allocation10 + $0xa0] sm:$0xff]
        %v1236 = vld [vmem:[#allocation10 + $0xa8] sm:$0xff]
        %v1237 = vld [vmem:[#allocation10 + $0xb0] sm:$0xff]
        %v1238 = vld [vmem:[#allocation10 + $0xb8] sm:$0xff]
        %v1239 = vld [vmem:[#allocation10 + $0xc0] sm:$0xff]
        %v1240 = vld [vmem:[#allocation10 + $0xc8] sm:$0xff]
        %v1241 = vld [vmem:[#allocation10 + $0xd0] sm:$0xff]
        %v1242 = vld [vmem:[#allocation10 + $0xd8] sm:$0xff]
        %v1243 = vld [vmem:[#allocation10 + $0xe0] sm:$0xff]
        %v1244 = vld [vmem:[#allocation10 + $0xe8] sm:$0xff]
        %v1245 = vld [vmem:[#allocation10 + $0xf0] sm:$0xff]
        %v1246 = vld [vmem:[#allocation10 + $0xf8] sm:$0xff]
        %v1247 = vld [vmem:[#allocation10 + $0x100] sm:$0xff]
        %v1248 = vld [vmem:[#allocation10 + $0x108] sm:$0xff]
        %v1249 = vld [vmem:[#allocation10 + $0x110] sm:$0xff]
        %v1250 = vld [vmem:[#allocation10 + $0x118] sm:$0xff]
        %v1251 = vld [vmem:[#allocation10 + $0x120] sm:$0xff]
        %v1252 = vld [vmem:[#allocation10 + $0x128] sm:$0xff]
        %v1253 = vld [vmem:[#allocation10 + $0x130] sm:$0xff]
        %v1254 = vld [vmem:[#allocation10 + $0x138] sm:$0xff]
        %v1255 = vld [vmem:[#allocation10 + $0x140] sm:$0xff]
        %v1256 = vld [vmem:[#allocation10 + $0x148] sm:$0xff]
        %v1257 = vld [vmem:[#allocation10 + $0x150] sm:$0xff]
        %v1258 = vld [vmem:[#allocation10 + $0x158] sm:$0xff]
        %v1259 = vld [vmem:[#allocation10 + $0x160] sm:$0xff]
        %v1260 = vld [vmem:[#allocation10 + $0x168] sm:$0xff]
        %v1261 = vld [vmem:[#allocation10 + $0x170] sm:$0xff]
        %v1262 = vld [vmem:[#allocation10 + $0x178] sm:$0xff]
        %v1263 = vld [vmem:[#allocation10 + $0x180] sm:$0xff]
        %v1264 = vld [vmem:[#allocation10 + $0x188] sm:$0xff]
        %v1265 = vld [vmem:[#allocation10 + $0x190] sm:$0xff]
        %v1266 = vld [vmem:[#allocation10 + $0x198] sm:$0xff]
        %v1267 = vld [vmem:[#allocation10 + $0x1a0] sm:$0xff]
        %v1268 = vld [vmem:[#allocation10 + $0x1a8] sm:$0xff]
        %v1269 = vld [vmem:[#allocation10 + $0x1b0] sm:$0xff]
        %v1270 = vld [vmem:[#allocation10 + $0x1b8] sm:$0xff]
        %v1271 = vld [vmem:[#allocation10 + $0x1c0] sm:$0xff]
        %v1272 = vld [vmem:[#allocation10 + $0x1c8] sm:$0xff]
        %v1273 = vld [vmem:[#allocation10 + $0x1d0] sm:$0xff]
        %v1274 = vld [vmem:[#allocation10 + $0x1d8] sm:$0xff]
        %v1275 = vld [vmem:[#allocation10 + $0x1e0] sm:$0xff]
        %v1276 = vld [vmem:[#allocation10 + $0x1e8] sm:$0xff]
        %v1277 = vld [vmem:[#allocation10 + $0x1f0] sm:$0xff]
        %v1278 = vld [vmem:[#allocation10 + $0x1f8] sm:$0xff]
        %v1279 = vld [vmem:[%s6] sm:$0x1]
        %v1281 = vlaneseq
        %v1282 = vshrl.u32 %v1281, 7
        %v1283 = vsub.s32 0, %v1282
        %v1284 = vrot.slane %v1279, %v1283
        %1286 = vmatprep.subr.mxu0 0.0
        %1287 = vmatpush1.msra.mxu0 %v1230
        %1288 = vmatprep.subr.mxu0 0.0
        %1289 = vmatpush1.msra.mxu0 %v1229
        %1290 = vmatprep.subr.mxu0 0.0
        %1291 = vmatpush1.msra.mxu0 %v1228
        %1292 = vmatprep.subr.mxu0 0.0
        %1293 = vmatpush1.msra.mxu0 %v1227
        %1294 = vmatprep.subr.mxu0 0.0
        %1295 = vmatpush1.msra.mxu0 %v1226
        %1296 = vmatprep.subr.mxu0 0.0
        %1297 = vmatpush1.msra.mxu0 %v1225
        %1298 = vmatprep.subr.mxu0 0.0
        %1299 = vmatpush1.msra.mxu0 %v1224
        %1300 = vmatprep.subr.mxu0 0.0
        %1301 = vmatpush1.msra.mxu0 %v1223
        %1302 = vmatprep.subr.mxu0 0.0
        %1303 = vmatpush1.msra.mxu0 %v1222
        %1304 = vmatprep.subr.mxu0 0.0
        %1305 = vmatpush1.msra.mxu0 %v1221
        %1306 = vmatprep.subr.mxu0 0.0
        %1307 = vmatpush1.msra.mxu0 %v1220
        %1308 = vmatprep.subr.mxu0 0.0
        %1309 = vmatpush1.msra.mxu0 %v1219
        %1310 = vmatprep.subr.mxu0 0.0
        %1311 = vmatpush1.msra.mxu0 %v1218
        %1312 = vmatprep.subr.mxu0 0.0
        %1313 = vmatpush1.msra.mxu0 %v1217
        %1314 = vmatprep.subr.mxu0 0.0
        %1315 = vmatpush1.msra.mxu0 %v1216
        %1316 = vmatprep.subr.mxu0 0.0
        %1317 = vmatpush1.msra.mxu0 %v1215
        %1318 = vmatprep.subr.mxu0 0.0
        %1319 = vmatpush2.msra.mxu0 %v1246
        %1320 = vmatprep.subr.mxu0 0.0
        %1321 = vmatpush2.msra.mxu0 %v1245
        %1322 = vmatprep.subr.mxu0 0.0
        %1323 = vmatpush2.msra.mxu0 %v1244
        %1324 = vmatprep.subr.mxu0 0.0
        %1325 = vmatpush2.msra.mxu0 %v1243
        %1326 = vmatprep.subr.mxu0 0.0
        %1327 = vmatpush2.msra.mxu0 %v1242
        %1328 = vmatprep.subr.mxu0 0.0
        %1329 = vmatpush2.msra.mxu0 %v1241
        %1330 = vmatprep.subr.mxu0 0.0
        %1331 = vmatpush2.msra.mxu0 %v1240
        %1332 = vmatprep.subr.mxu0 0.0
        %1333 = vmatpush2.msra.mxu0 %v1239
        %1334 = vmatprep.subr.mxu0 0.0
        %1335 = vmatpush2.msra.mxu0 %v1238
        %1336 = vmatprep.subr.mxu0 0.0
        %1337 = vmatpush2.msra.mxu0 %v1237
        %1338 = vmatprep.subr.mxu0 0.0
        %1339 = vmatpush2.msra.mxu0 %v1236
        %1340 = vmatprep.subr.mxu0 0.0
        %1341 = vmatpush2.msra.mxu0 %v1235
        %1342 = vmatprep.subr.mxu0 0.0
        %1343 = vmatpush2.msra.mxu0 %v1234
        %1344 = vmatprep.subr.mxu0 0.0
        %1345 = vmatpush2.msra.mxu0 %v1233
        %1346 = vmatprep.subr.mxu0 0.0
        %1347 = vmatpush2.msra.mxu0 %v1232
        %1348 = vmatprep.subr.mxu0 0.0
        %1349 = vmatpush2.msra.mxu0 %v1231
        %1350 = vmatprep.mubr.f32.mxu0 %v1212
        %1351 = vmatmul.mubr.f32.gmra.mxu0 %v1211
        %v1352 = vpop.f32.mrf.mxu0
        %v1353 = vadd.f32 %v1284, %v1352
        %v1354 = vpop.f32.mrf.mxu0
        %1355 = vdwg.mxu0
        %1356 = vmatprep.subr.mxu0 0.0
        %1357 = vmatpush1.msra.mxu0 %v1262
        %1358 = vmatprep.subr.mxu0 0.0
        %1359 = vmatpush1.msra.mxu0 %v1261
        %1360 = vmatprep.subr.mxu0 0.0
        %1361 = vmatpush1.msra.mxu0 %v1260
        %1362 = vmatprep.subr.mxu0 0.0
        %1363 = vmatpush1.msra.mxu0 %v1259
        %1364 = vmatprep.subr.mxu0 0.0
        %1365 = vmatpush1.msra.mxu0 %v1258
        %1366 = vmatprep.subr.mxu0 0.0
        %1367 = vmatpush1.msra.mxu0 %v1257
        %1368 = vmatprep.subr.mxu0 0.0
        %1369 = vmatpush1.msra.mxu0 %v1256
        %1370 = vmatprep.subr.mxu0 0.0
        %1371 = vmatpush1.msra.mxu0 %v1255
        %1372 = vmatprep.subr.mxu0 0.0
        %1373 = vmatpush1.msra.mxu0 %v1254
        %1374 = vmatprep.subr.mxu0 0.0
        %1375 = vmatpush1.msra.mxu0 %v1253
        %1376 = vmatprep.subr.mxu0 0.0
        %1377 = vmatpush1.msra.mxu0 %v1252
        %1378 = vmatprep.subr.mxu0 0.0
        %1379 = vmatpush1.msra.mxu0 %v1251
        %1380 = vmatprep.subr.mxu0 0.0
        %1381 = vmatpush1.msra.mxu0 %v1250
        %1382 = vmatprep.subr.mxu0 0.0
        %1383 = vmatpush1.msra.mxu0 %v1249
        %1384 = vmatprep.subr.mxu0 0.0
        %1385 = vmatpush1.msra.mxu0 %v1248
        %1386 = vmatprep.subr.mxu0 0.0
        %1387 = vmatpush1.msra.mxu0 %v1247
        %1388 = vmatprep.subr.mxu0 0.0
        %1389 = vmatpush2.msra.mxu0 %v1278
        %1390 = vmatprep.subr.mxu0 0.0
        %1391 = vmatpush2.msra.mxu0 %v1277
        %1392 = vmatprep.subr.mxu0 0.0
        %1393 = vmatpush2.msra.mxu0 %v1276
        %1394 = vmatprep.subr.mxu0 0.0
        %1395 = vmatpush2.msra.mxu0 %v1275
        %1396 = vmatprep.subr.mxu0 0.0
        %1397 = vmatpush2.msra.mxu0 %v1274
        %1398 = vmatprep.subr.mxu0 0.0
        %1399 = vmatpush2.msra.mxu0 %v1273
        %1400 = vmatprep.subr.mxu0 0.0
        %1401 = vmatpush2.msra.mxu0 %v1272
        %1402 = vmatprep.subr.mxu0 0.0
        %1403 = vmatpush2.msra.mxu0 %v1271
        %1404 = vmatprep.subr.mxu0 0.0
        %1405 = vmatpush2.msra.mxu0 %v1270
        %1406 = vmatprep.subr.mxu0 0.0
        %1407 = vmatpush2.msra.mxu0 %v1269
        %1408 = vmatprep.subr.mxu0 0.0
        %1409 = vmatpush2.msra.mxu0 %v1268
        %1410 = vmatprep.subr.mxu0 0.0
        %1411 = vmatpush2.msra.mxu0 %v1267
        %1412 = vmatprep.subr.mxu0 0.0
        %1413 = vmatpush2.msra.mxu0 %v1266
        %1414 = vmatprep.subr.mxu0 0.0
        %1415 = vmatpush2.msra.mxu0 %v1265
        %1416 = vmatprep.subr.mxu0 0.0
        %1417 = vmatpush2.msra.mxu0 %v1264
        %1418 = vmatprep.subr.mxu0 0.0
        %1419 = vmatpush2.msra.mxu0 %v1263
        %1420 = vmatprep.mubr.f32.mxu0 %v1214
        %1421 = vmatmul.mubr.f32.gmra.mxu0 %v1213
        %v1422 = vpop.f32.mrf.mxu0
        %v1423 = vadd.f32 %v1353, %v1422
        %v1424 = vpop.f32.mrf.mxu0
        %1425 = vdwg.mxu0
        %1426 = vst [vmem:[%s350] sm:$0xff] %v1423
        %s1427 = sand.u32 %s186, 1
        %s1428 = scalar_lea.sflag [#allocation4], %s1427
        %s1429 = sand.u32 %s186, 1
        %s1430 = smul.addr %s1429, 8
        %s1431 = scalar_lea.vmem [#allocation11], %s1430
        // Predicated region
        $region69: #{tpu_custom_call.1} parent=47 // pred_check
          %p1432 = pneg %p196
        $region70: #{tpu_custom_call.1} parent=47 // pred_check_branch
          %1434 = sbr.rel (%p1432) target = $region72
        $region71: #{tpu_custom_call.1} parent=47 // pred_region
          %s1436 = ssub.s32 128, 128
          %1437 = vsyncadd %s1428, %s1436
          %s1438 = smul.addr %s26, 128
          %s1439 = scalar_lea.hbm %s7, %s1438
          %s1441 = sshll.u32 %s1431, 4
          %s1442 = int_to_ptr.vmem [resolvable:$true] %s1441
          %1444 = dma.vmem_to_hbm [thread:$0]  %s1442, 128, %s1439, %s1428
        $region72: #{tpu_custom_call.1} parent=47 // pred_fallthru
          _
      $region48: #{tpu_custom_call.1} parent=5 // pred_fallthru
        _
      %p1445 = scmp.le.s32.totalorder 2, %s21
      // Predicated region
      $region73: #{tpu_custom_call.1} parent=5 // pred_check
        %p1446 = pneg %p1445
      $region74: #{tpu_custom_call.1} parent=5 // pred_check_branch
        %1448 = sbr.rel (%p1446) target = $region76
      $region75: #{tpu_custom_call.1} parent=5 // pred_region
        %s1449 = ssub.s32 %s21, 2
        // Predicated region
        $region77: #{tpu_custom_call.1} parent=75 // pred_check
          %p1450 = pneg %p202
        $region78: #{tpu_custom_call.1} parent=75 // pred_check_branch
          %1452 = sbr.rel (%p1450) target = $region80
        $region79: #{tpu_custom_call.1} parent=75 // pred_region
          %s1453 = sand.u32 %s187, 1
          %s1454 = scalar_lea.sflag [#allocation4], %s1453
          %s1455 = sand.u32 %s187, 1
          %s1456 = smul.addr %s1455, 8
          %s1457 = scalar_lea.vmem [#allocation11], %s1456
          %1458 = dma.done %s1454, 128
        $region80: #{tpu_custom_call.1} parent=75 // pred_fallthru
          _
      $region76: #{tpu_custom_call.1} parent=5 // pred_fallthru
        _
    $region6: #{tpu_custom_call.1} parent=1 // loop_footer
      %s25 = sadd.s32 1, %s21
    $region7: #{tpu_custom_call.1} parent=1 // loop_footer_branch
      %20 = sbr.rel target = $region3
    $region8: #{tpu_custom_call.1} parent=1 // loop_exit
      _
    %1459 = vsyncpa [#allocation3], 1
    %s1460 = scalar_lea.sflag [#allocation3], 1
    %1461 = vsyncpa %s1460, 1
    %1462 = vsyncpa [#allocation6], 1
    %1463 = vsyncpa [#allocation9], 1
    %1464 = vsyncpa [#allocation4], 1
    %s1465 = scalar_lea.sflag [#allocation4], 1
    %1466 = vsyncpa %s1465, 1

</llo_original>
